<compile_context>
chip_gen: v7x
topology: tpu7x:2x2x1
jax: 0.10.0
libtpu: 0.0.40
codegen_flags: <defaults>
</compile_context>

<pallas_src>
import jax
import jax.numpy as jnp
import numpy as np
from jax import lax
from jax.experimental import pallas as pl
from jax.experimental.pallas import tpu as pltpu

KSIZE = 7   # PyTorch module allows 3 or 7; this implementation uses 7
PAD = 3     # padding for kernel_size 7


def _round_up(a, b):
    return (a + b - 1) // b * b


def _make_kernel(C, c_block, H, W, ragged):
    HW = H * W
    PADF = PAD * W + PAD          # flat halo length: 3 rows + 3 columns

    def kernel(w_ref, col_ref, x_ref, o_ref, mpad_ref):
        c = pl.program_id(1)
        nc = pl.num_programs(1)
        x = x_ref[0]                                        # (c_block, HW)

        # --- streaming channel max, accumulated directly in the output block ---
        def combine(bm):
            @pl.when(c == 0)
            def _():
                o_ref[0] = bm

            @pl.when(c > 0)
            def _():
                o_ref[0] = jnp.maximum(o_ref[0], bm)

        if ragged:
            # Mask the out-of-range channel tail only on the last block.
            @pl.when(c < nc - 1)
            def _():
                combine(jnp.max(x, axis=0, keepdims=True))

            @pl.when(c == nc - 1)
            def _():
                ch = c * c_block + lax.broadcasted_iota(jnp.int32, x.shape, 0)
                xm = jnp.where(ch < C, x, -jnp.inf)
                combine(jnp.max(xm, axis=0, keepdims=True))
        else:
            combine(jnp.max(x, axis=0, keepdims=True))

        # --- finalize: 7x7 conv (cross-correlation) + sigmoid, once per batch ---
        @pl.when(c == nc - 1)
        def _finalize():
            m = o_ref[0].astype(jnp.float32)                # (1, HW) channel max
            halo = jnp.zeros((1, PADF), jnp.float32)
            mpad_ref[:, 0:PADF] = halo
            mpad_ref[:, PADF + HW:PADF + HW + PADF] = halo
            mpad_ref[:, PADF:PADF + HW] = m

            col = col_ref[...]                              # (1, HW) int32 column index
            acc = jnp.zeros((1, HW), jnp.float32)
            for dj in range(-PAD, PAD + 1):
                cj = col + dj
                valid = (cj >= 0) & (cj < W)                # column taps that stay in-row
                for di in range(-PAD, PAD + 1):
                    # shifted[n] = m[n + di*W + dj]; row overflow lands in the zero halo.
                    start = PADF + di * W + dj
                    shifted = mpad_ref[:, start:start + HW]
                    wv = w_ref[di + PAD, dj + PAD]          # scalar weight from SMEM
                    acc = acc + jnp.where(valid, shifted, 0.0) * wv
            o_ref[0] = jax.nn.sigmoid(acc).astype(o_ref.dtype)

    return kernel


def spatial_attention(x, w, *, c_block=None, vmem_limit_bytes=None):
    """x: (N, C, H, W); w: (7, 7) Conv2d(1, 1, 7, bias=False) weight. Returns (N, 1, H, W)."""
    N, C, H, W = x.shape
    HW = H * W
    PADF = PAD * W + PAD
    itemsize = x.dtype.itemsize

    # Generation-aware VMEM limit (~75% of physical VMEM, conservative fallback).
    if vmem_limit_bytes is None:
        vmem_cap = 64 * 1024 * 1024
        try:
            info = pltpu.get_tpu_info()
            vmem_cap = int(getattr(info, "vmem_capacity_bytes", vmem_cap))
        except Exception:
            pass
        vmem_limit_bytes = max(32 * 1024 * 1024, (vmem_cap * 3) // 4)

    # Padding-aware channel-block sizing ((8,128) VMEM tiling, double buffering).
    if c_block is None:
        hw_pad = _round_up(HW, 128)
        fixed = 2 * 8 * hw_pad * itemsize                   # resident output block
        fixed += 2 * 8 * hw_pad * 4                         # col index input (dbl-buffered)
        fixed += 8 * _round_up(HW + 2 * PADF, 128) * 4      # flat halo-padded scratch
        fixed += 1 << 20                                    # slack for metadata/sems
        per_group = 2 * 8 * hw_pad * itemsize               # 8 channels, double buffered
        usable = max(int(vmem_limit_bytes) - fixed, per_group)
        groups = max(1, usable // per_group)
        c_block = int(min(C, groups * 8))
        if c_block < C:
            c_block = max(8, (c_block // 8) * 8)            # keep sublane-dim multiple of 8

    num_cb = pl.cdiv(C, c_block)
    ragged = (C % c_block) != 0

    xf = x.reshape(N, C, HW)                                # free view: NCHW is contiguous
    col = (jnp.arange(HW, dtype=jnp.int32) % W).reshape(1, HW)
    w2 = jnp.asarray(w, jnp.float32).reshape(KSIZE, KSIZE)

    kernel = _make_kernel(C, c_block, H, W, ragged)

    # TODO(synk): when N == 1 on v7x (2 TensorCores), split the channel grid axis across
    # cores (per-core partial max + tiny cross-core combine) instead of relying on the
    # batch axis alone for megacore parallelism.
    out_flat = pl.pallas_call(
        kernel,
        out_shape=jax.ShapeDtypeStruct((N, 1, HW), x.dtype),
        grid=(N, num_cb),
        in_specs=[
            # 7x7 conv weights: small scalar table, kept in SMEM.
            pl.BlockSpec(memory_space=pltpu.MemorySpace.SMEM),
            # Grid-invariant column-index map (used only at finalize).
            pl.BlockSpec((1, HW), lambda b, c: (0, 0)),
            # Lane-dense (1, c_block, H*W) input tile per grid step.
            pl.BlockSpec((1, c_block, HW), lambda b, c: (b, c, 0)),
        ],
        # Output block revisited across the channel axis: doubles as the max accumulator.
        out_specs=pl.BlockSpec((1, 1, HW), lambda b, c: (b, 0, 0)),
        scratch_shapes=[pltpu.VMEM((1, HW + 2 * PADF), jnp.float32)],
        compiler_params=pltpu.CompilerParams(
            dimension_semantics=("parallel", "arbitrary"),
            vmem_limit_bytes=int(vmem_limit_bytes),
        ),
    )(w2, col, xf)
    return out_flat.reshape(N, 1, H, W)


def spatial_attention_reference(x, w):
    """Pure-JAX reference mirroring the PyTorch forward."""
    m = jnp.max(x, axis=1, keepdims=True)                   # (N, 1, H, W)
    y = lax.conv_general_dilated(
        m, jnp.asarray(w, jnp.float32).reshape(1, 1, KSIZE, KSIZE),
        window_strides=(1, 1),
        padding=((PAD, PAD), (PAD, PAD)),
        dimension_numbers=("NCHW", "OIHW", "NCHW"),
        precision=lax.Precision.HIGHEST,
    )
    return jax.nn.sigmoid(y)


if __name__ == "__main__":
    key = jax.random.PRNGKey(0)
    kx, kw = jax.random.split(key)

    N, C, H, W = 2, 4, 16, 16
    x = jax.random.normal(kx, (N, C, H, W), dtype=jnp.float32)
    # Deterministic Conv2d(1, 1, 7, bias=False) weight.
    w = jax.random.normal(kw, (KSIZE, KSIZE), dtype=jnp.float32) * 0.1

    out = jax.block_until_ready(spatial_attention(x, w))
    ref = jax.block_until_ready(spatial_attention_reference(x, w))
    np.testing.assert_allclose(np.asarray(out), np.asarray(ref), rtol=1e-4, atol=1e-4)

    print("KERNEL_OK")
</pallas_src>

<mosaic_0001>
module attributes {stable_mosaic.version = 11 : i64} {
  func.func @kernel(%arg0: i32, %arg1: i32, %arg2: memref<7x7xf32, #tpu.memory_space<smem>>, %arg3: memref<1x256xi32, #tpu.memory_space<vmem>>, %arg4: memref<1x4x256xf32, #tpu.memory_space<vmem>>, %arg5: memref<1x1x256xf32, #tpu.memory_space<vmem>>, %arg6: memref<1x358xf32, #tpu.memory_space<vmem>>) attributes {dimension_semantics = [#tpu.dimension_semantics<parallel>, #tpu.dimension_semantics<arbitrary>], iteration_bounds = array<i64: 2, 1>, scalar_prefetch = 0 : i64, scratch_operands = 1 : i64, tpu.core_type = #tpu.core_type<tc>, window_params = [{transform_indices = @transform_0, window_bounds = array<i64: 7, 7>}, {pipeline_mode = #tpu.pipeline_mode<synchronous>, transform_indices = @transform_1, window_bounds = array<i64: 1, 256>}, {transform_indices = @transform_2, window_bounds = array<i64: 1, 4, 256>}, {transform_indices = @transform_3, window_bounds = array<i64: 1, 1, 256>}]} {
    %c0 = arith.constant 0 : index
    %c0_0 = arith.constant 0 : index
    %c0_1 = arith.constant 0 : index
    %0 = vector.load %arg4[%c0, %c0_0, %c0_1] : memref<1x4x256xf32, #tpu.memory_space<vmem>>, vector<1x4x256xf32>
    %1 = vector.shape_cast %0 : vector<1x4x256xf32> to vector<4x256xf32>
    %cst = arith.constant dense<0xFF800000> : vector<256xf32>
    %2 = vector.multi_reduction <maximumf>, %1, %cst [0] : vector<4x256xf32> to vector<256xf32>
    %3 = vector.shape_cast %2 : vector<256xf32> to vector<1x256xf32>
    %c0_i32 = arith.constant 0 : i32
    %4 = arith.cmpi eq, %arg1, %c0_i32 : i32
    %5 = arith.extui %4 : i1 to i32
    %c0_i32_2 = arith.constant 0 : i32
    %6 = arith.cmpi ne, %5, %c0_i32_2 : i32
    scf.if %6 {
      %c0_7 = arith.constant 0 : index
      %c0_8 = arith.constant 0 : index
      %c0_9 = arith.constant 0 : index
      %13 = vector.load %arg5[%c0_7, %c0_8, %c0_9] : memref<1x1x256xf32, #tpu.memory_space<vmem>>, vector<1x1x256xf32>
      %14 = vector.shape_cast %13 : vector<1x1x256xf32> to vector<1x256xf32>
      %15 = vector.shape_cast %3 : vector<1x256xf32> to vector<1x1x256xf32>
      tpu.vector_store %arg5[%c0_7, %c0_8, %c0_9], %15 {strides = array<i32>} : memref<1x1x256xf32, #tpu.memory_space<vmem>>, vector<1x1x256xf32>,
    } else {
    }
    %c0_i32_3 = arith.constant 0 : i32
    %7 = arith.cmpi sgt, %arg1, %c0_i32_3 : i32
    %8 = arith.extui %7 : i1 to i32
    %c0_i32_4 = arith.constant 0 : i32
    %9 = arith.cmpi ne, %8, %c0_i32_4 : i32
    scf.if %9 {
      %c0_7 = arith.constant 0 : index
      %c0_8 = arith.constant 0 : index
      %c0_9 = arith.constant 0 : index
      %13 = vector.load %arg5[%c0_7, %c0_8, %c0_9] : memref<1x1x256xf32, #tpu.memory_space<vmem>>, vector<1x1x256xf32>
      %14 = vector.shape_cast %13 : vector<1x1x256xf32> to vector<1x256xf32>
      %15 = arith.maximumf %14, %3 : vector<1x256xf32>
      %c0_10 = arith.constant 0 : index
      %c0_11 = arith.constant 0 : index
      %c0_12 = arith.constant 0 : index
      %16 = vector.load %arg5[%c0_10, %c0_11, %c0_12] : memref<1x1x256xf32, #tpu.memory_space<vmem>>, vector<1x1x256xf32>
      %17 = vector.shape_cast %16 : vector<1x1x256xf32> to vector<1x256xf32>
      %18 = vector.shape_cast %15 : vector<1x256xf32> to vector<1x1x256xf32>
      tpu.vector_store %arg5[%c0_10, %c0_11, %c0_12], %18 {strides = array<i32>} : memref<1x1x256xf32, #tpu.memory_space<vmem>>, vector<1x1x256xf32>,
    } else {
    }
    %c0_i32_5 = arith.constant 0 : i32
    %10 = arith.cmpi eq, %arg1, %c0_i32_5 : i32
    %11 = arith.extui %10 : i1 to i32
    %c0_i32_6 = arith.constant 0 : i32
    %12 = arith.cmpi ne, %11, %c0_i32_6 : i32
    scf.if %12 {
      %c0_7 = arith.constant 0 : index
      %c0_8 = arith.constant 0 : index
      %c0_9 = arith.constant 0 : index
      %13 = vector.load %arg5[%c0_7, %c0_8, %c0_9] : memref<1x1x256xf32, #tpu.memory_space<vmem>>, vector<1x1x256xf32>
      %14 = vector.shape_cast %13 : vector<1x1x256xf32> to vector<1x256xf32>
      %cst_10 = arith.constant 0.000000e+00 : f32
      %15 = vector.broadcast %cst_10 : f32 to vector<1x51xf32>
      %c0_11 = arith.constant 0 : index
      %c0_12 = arith.constant 0 : index
      %16 = vector.load %arg6[%c0_11, %c0_12] : memref<1x358xf32, #tpu.memory_space<vmem>>, vector<1x51xf32>
      tpu.vector_store %arg6[%c0_11, %c0_12], %15 {strides = array<i32>} : memref<1x358xf32, #tpu.memory_space<vmem>>, vector<1x51xf32>,
      %c0_13 = arith.constant 0 : index
      %c307 = arith.constant 307 : index
      %17 = vector.load %arg6[%c0_13, %c307] : memref<1x358xf32, #tpu.memory_space<vmem>>, vector<1x51xf32>
      tpu.vector_store %arg6[%c0_13, %c307], %15 {strides = array<i32>} : memref<1x358xf32, #tpu.memory_space<vmem>>, vector<1x51xf32>,
      %c0_14 = arith.constant 0 : index
      %c51 = arith.constant 51 : index
      %18 = vector.load %arg6[%c0_14, %c51] : memref<1x358xf32, #tpu.memory_space<vmem>>, vector<1x256xf32>
      tpu.vector_store %arg6[%c0_14, %c51], %14 {strides = array<i32>} : memref<1x358xf32, #tpu.memory_space<vmem>>, vector<1x256xf32>,
      %c0_15 = arith.constant 0 : index
      %c0_16 = arith.constant 0 : index
      %19 = vector.load %arg3[%c0_15, %c0_16] : memref<1x256xi32, #tpu.memory_space<vmem>>, vector<1x256xi32>
      %cst_17 = arith.constant 0.000000e+00 : f32
      %20 = vector.broadcast %cst_17 : f32 to vector<1x256xf32>
      %c-3_i32 = arith.constant -3 : i32
      %21 = vector.broadcast %c-3_i32 : i32 to vector<1x256xi32>
      %22 = arith.addi %19, %21 : vector<1x256xi32>
      %c0_i32_18 = arith.constant 0 : i32
      %23 = vector.broadcast %c0_i32_18 : i32 to vector<1x256xi32>
      %24 = arith.cmpi sge, %22, %23 : vector<1x256xi32>
      %c16_i32 = arith.constant 16 : i32
      %25 = vector.broadcast %c16_i32 : i32 to vector<1x256xi32>
      %26 = arith.cmpi slt, %22, %25 : vector<1x256xi32>
      %27 = arith.andi %24, %26 : vector<1x256xi1>
      %c0_19 = arith.constant 0 : index
      %c0_20 = arith.constant 0 : index
      %28 = vector.load %arg6[%c0_19, %c0_20] : memref<1x358xf32, #tpu.memory_space<vmem>>, vector<1x256xf32>
      %c0_21 = arith.constant 0 : index
      %c0_22 = arith.constant 0 : index
      %29 = memref.load %arg2[%c0_21, %c0_22] : memref<7x7xf32, #tpu.memory_space<smem>>
      %cst_23 = arith.constant 0.000000e+00 : f32
      %30 = vector.broadcast %cst_23 : f32 to vector<1x256xf32>
      %31 = arith.select %27, %28, %30 : vector<1x256xi1>, vector<1x256xf32>
      %32 = vector.broadcast %29 : f32 to vector<1x256xf32>
      %33 = arith.mulf %31, %32 : vector<1x256xf32>
      %34 = arith.addf %20, %33 : vector<1x256xf32>
      %c0_24 = arith.constant 0 : index
      %c16 = arith.constant 16 : index
      %35 = vector.load %arg6[%c0_24, %c16] : memref<1x358xf32, #tpu.memory_space<vmem>>, vector<1x256xf32>
      %c1 = arith.constant 1 : index
      %c0_25 = arith.constant 0 : index
      %36 = memref.load %arg2[%c1, %c0_25] : memref<7x7xf32, #tpu.memory_space<smem>>
      %cst_26 = arith.constant 0.000000e+00 : f32
      %37 = vector.broadcast %cst_26 : f32 to vector<1x256xf32>
      %38 = arith.select %27, %35, %37 : vector<1x256xi1>, vector<1x256xf32>
      %39 = vector.broadcast %36 : f32 to vector<1x256xf32>
      %40 = arith.mulf %38, %39 : vector<1x256xf32>
      %41 = arith.addf %34, %40 : vector<1x256xf32>
      %c0_27 = arith.constant 0 : index
      %c32 = arith.constant 32 : index
      %42 = vector.load %arg6[%c0_27, %c32] : memref<1x358xf32, #tpu.memory_space<vmem>>, vector<1x256xf32>
      %c2 = arith.constant 2 : index
      %c0_28 = arith.constant 0 : index
      %43 = memref.load %arg2[%c2, %c0_28] : memref<7x7xf32, #tpu.memory_space<smem>>
      %cst_29 = arith.constant 0.000000e+00 : f32
      %44 = vector.broadcast %cst_29 : f32 to vector<1x256xf32>
      %45 = arith.select %27, %42, %44 : vector<1x256xi1>, vector<1x256xf32>
      %46 = vector.broadcast %43 : f32 to vector<1x256xf32>
      %47 = arith.mulf %45, %46 : vector<1x256xf32>
      %48 = arith.addf %41, %47 : vector<1x256xf32>
      %c0_30 = arith.constant 0 : index
      %c48 = arith.constant 48 : index
      %49 = vector.load %arg6[%c0_30, %c48] : memref<1x358xf32, #tpu.memory_space<vmem>>, vector<1x256xf32>
      %c3 = arith.constant 3 : index
      %c0_31 = arith.constant 0 : index
      %50 = memref.load %arg2[%c3, %c0_31] : memref<7x7xf32, #tpu.memory_space<smem>>
      %cst_32 = arith.constant 0.000000e+00 : f32
      %51 = vector.broadcast %cst_32 : f32 to vector<1x256xf32>
      %52 = arith.select %27, %49, %51 : vector<1x256xi1>, vector<1x256xf32>
      %53 = vector.broadcast %50 : f32 to vector<1x256xf32>
      %54 = arith.mulf %52, %53 : vector<1x256xf32>
      %55 = arith.addf %48, %54 : vector<1x256xf32>
      %c0_33 = arith.constant 0 : index
      %c64 = arith.constant 64 : index
      %56 = vector.load %arg6[%c0_33, %c64] : memref<1x358xf32, #tpu.memory_space<vmem>>, vector<1x256xf32>
      %c4 = arith.constant 4 : index
      %c0_34 = arith.constant 0 : index
      %57 = memref.load %arg2[%c4, %c0_34] : memref<7x7xf32, #tpu.memory_space<smem>>
      %cst_35 = arith.constant 0.000000e+00 : f32
      %58 = vector.broadcast %cst_35 : f32 to vector<1x256xf32>
      %59 = arith.select %27, %56, %58 : vector<1x256xi1>, vector<1x256xf32>
      %60 = vector.broadcast %57 : f32 to vector<1x256xf32>
      %61 = arith.mulf %59, %60 : vector<1x256xf32>
      %62 = arith.addf %55, %61 : vector<1x256xf32>
      %c0_36 = arith.constant 0 : index
      %c80 = arith.constant 80 : index
      %63 = vector.load %arg6[%c0_36, %c80] : memref<1x358xf32, #tpu.memory_space<vmem>>, vector<1x256xf32>
      %c5 = arith.constant 5 : index
      %c0_37 = arith.constant 0 : index
      %64 = memref.load %arg2[%c5, %c0_37] : memref<7x7xf32, #tpu.memory_space<smem>>
      %cst_38 = arith.constant 0.000000e+00 : f32
      %65 = vector.broadcast %cst_38 : f32 to vector<1x256xf32>
      %66 = arith.select %27, %63, %65 : vector<1x256xi1>, vector<1x256xf32>
      %67 = vector.broadcast %64 : f32 to vector<1x256xf32>
      %68 = arith.mulf %66, %67 : vector<1x256xf32>
      %69 = arith.addf %62, %68 : vector<1x256xf32>
      %c0_39 = arith.constant 0 : index
      %c96 = arith.constant 96 : index
      %70 = vector.load %arg6[%c0_39, %c96] : memref<1x358xf32, #tpu.memory_space<vmem>>, vector<1x256xf32>
      %c6 = arith.constant 6 : index
      %c0_40 = arith.constant 0 : index
      %71 = memref.load %arg2[%c6, %c0_40] : memref<7x7xf32, #tpu.memory_space<smem>>
      %cst_41 = arith.constant 0.000000e+00 : f32
      %72 = vector.broadcast %cst_41 : f32 to vector<1x256xf32>
      %73 = arith.select %27, %70, %72 : vector<1x256xi1>, vector<1x256xf32>
      %74 = vector.broadcast %71 : f32 to vector<1x256xf32>
      %75 = arith.mulf %73, %74 : vector<1x256xf32>
      %76 = arith.addf %69, %75 : vector<1x256xf32>
      %c-2_i32 = arith.constant -2 : i32
      %77 = vector.broadcast %c-2_i32 : i32 to vector<1x256xi32>
      %78 = arith.addi %19, %77 : vector<1x256xi32>
      %c0_i32_42 = arith.constant 0 : i32
      %79 = vector.broadcast %c0_i32_42 : i32 to vector<1x256xi32>
      %80 = arith.cmpi sge, %78, %79 : vector<1x256xi32>
      %c16_i32_43 = arith.constant 16 : i32
      %81 = vector.broadcast %c16_i32_43 : i32 to vector<1x256xi32>
      %82 = arith.cmpi slt, %78, %81 : vector<1x256xi32>
      %83 = arith.andi %80, %82 : vector<1x256xi1>
      %c0_44 = arith.constant 0 : index
      %c1_45 = arith.constant 1 : index
      %84 = vector.load %arg6[%c0_44, %c1_45] : memref<1x358xf32, #tpu.memory_space<vmem>>, vector<1x256xf32>
      %c0_46 = arith.constant 0 : index
      %c1_47 = arith.constant 1 : index
      %85 = memref.load %arg2[%c0_46, %c1_47] : memref<7x7xf32, #tpu.memory_space<smem>>
      %cst_48 = arith.constant 0.000000e+00 : f32
      %86 = vector.broadcast %cst_48 : f32 to vector<1x256xf32>
      %87 = arith.select %83, %84, %86 : vector<1x256xi1>, vector<1x256xf32>
      %88 = vector.broadcast %85 : f32 to vector<1x256xf32>
      %89 = arith.mulf %87, %88 : vector<1x256xf32>
      %90 = arith.addf %76, %89 : vector<1x256xf32>
      %c0_49 = arith.constant 0 : index
      %c17 = arith.constant 17 : index
      %91 = vector.load %arg6[%c0_49, %c17] : memref<1x358xf32, #tpu.memory_space<vmem>>, vector<1x256xf32>
      %c1_50 = arith.constant 1 : index
      %c1_51 = arith.constant 1 : index
      %92 = memref.load %arg2[%c1_50, %c1_51] : memref<7x7xf32, #tpu.memory_space<smem>>
      %cst_52 = arith.constant 0.000000e+00 : f32
      %93 = vector.broadcast %cst_52 : f32 to vector<1x256xf32>
      %94 = arith.select %83, %91, %93 : vector<1x256xi1>, vector<1x256xf32>
      %95 = vector.broadcast %92 : f32 to vector<1x256xf32>
      %96 = arith.mulf %94, %95 : vector<1x256xf32>
      %97 = arith.addf %90, %96 : vector<1x256xf32>
      %c0_53 = arith.constant 0 : index
      %c33 = arith.constant 33 : index
      %98 = vector.load %arg6[%c0_53, %c33] : memref<1x358xf32, #tpu.memory_space<vmem>>, vector<1x256xf32>
      %c2_54 = arith.constant 2 : index
      %c1_55 = arith.constant 1 : index
      %99 = memref.load %arg2[%c2_54, %c1_55] : memref<7x7xf32, #tpu.memory_space<smem>>
      %cst_56 = arith.constant 0.000000e+00 : f32
      %100 = vector.broadcast %cst_56 : f32 to vector<1x256xf32>
      %101 = arith.select %83, %98, %100 : vector<1x256xi1>, vector<1x256xf32>
      %102 = vector.broadcast %99 : f32 to vector<1x256xf32>
      %103 = arith.mulf %101, %102 : vector<1x256xf32>
      %104 = arith.addf %97, %103 : vector<1x256xf32>
      %c0_57 = arith.constant 0 : index
      %c49 = arith.constant 49 : index
      %105 = vector.load %arg6[%c0_57, %c49] : memref<1x358xf32, #tpu.memory_space<vmem>>, vector<1x256xf32>
      %c3_58 = arith.constant 3 : index
      %c1_59 = arith.constant 1 : index
      %106 = memref.load %arg2[%c3_58, %c1_59] : memref<7x7xf32, #tpu.memory_space<smem>>
      %cst_60 = arith.constant 0.000000e+00 : f32
      %107 = vector.broadcast %cst_60 : f32 to vector<1x256xf32>
      %108 = arith.select %83, %105, %107 : vector<1x256xi1>, vector<1x256xf32>
      %109 = vector.broadcast %106 : f32 to vector<1x256xf32>
      %110 = arith.mulf %108, %109 : vector<1x256xf32>
      %111 = arith.addf %104, %110 : vector<1x256xf32>
      %c0_61 = arith.constant 0 : index
      %c65 = arith.constant 65 : index
      %112 = vector.load %arg6[%c0_61, %c65] : memref<1x358xf32, #tpu.memory_space<vmem>>, vector<1x256xf32>
      %c4_62 = arith.constant 4 : index
      %c1_63 = arith.constant 1 : index
      %113 = memref.load %arg2[%c4_62, %c1_63] : memref<7x7xf32, #tpu.memory_space<smem>>
      %cst_64 = arith.constant 0.000000e+00 : f32
      %114 = vector.broadcast %cst_64 : f32 to vector<1x256xf32>
      %115 = arith.select %83, %112, %114 : vector<1x256xi1>, vector<1x256xf32>
      %116 = vector.broadcast %113 : f32 to vector<1x256xf32>
      %117 = arith.mulf %115, %116 : vector<1x256xf32>
      %118 = arith.addf %111, %117 : vector<1x256xf32>
      %c0_65 = arith.constant 0 : index
      %c81 = arith.constant 81 : index
      %119 = vector.load %arg6[%c0_65, %c81] : memref<1x358xf32, #tpu.memory_space<vmem>>, vector<1x256xf32>
      %c5_66 = arith.constant 5 : index
      %c1_67 = arith.constant 1 : index
      %120 = memref.load %arg2[%c5_66, %c1_67] : memref<7x7xf32, #tpu.memory_space<smem>>
      %cst_68 = arith.constant 0.000000e+00 : f32
      %121 = vector.broadcast %cst_68 : f32 to vector<1x256xf32>
      %122 = arith.select %83, %119, %121 : vector<1x256xi1>, vector<1x256xf32>
      %123 = vector.broadcast %120 : f32 to vector<1x256xf32>
      %124 = arith.mulf %122, %123 : vector<1x256xf32>
      %125 = arith.addf %118, %124 : vector<1x256xf32>
      %c0_69 = arith.constant 0 : index
      %c97 = arith.constant 97 : index
      %126 = vector.load %arg6[%c0_69, %c97] : memref<1x358xf32, #tpu.memory_space<vmem>>, vector<1x256xf32>
      %c6_70 = arith.constant 6 : index
      %c1_71 = arith.constant 1 : index
      %127 = memref.load %arg2[%c6_70, %c1_71] : memref<7x7xf32, #tpu.memory_space<smem>>
      %cst_72 = arith.constant 0.000000e+00 : f32
      %128 = vector.broadcast %cst_72 : f32 to vector<1x256xf32>
      %129 = arith.select %83, %126, %128 : vector<1x256xi1>, vector<1x256xf32>
      %130 = vector.broadcast %127 : f32 to vector<1x256xf32>
      %131 = arith.mulf %129, %130 : vector<1x256xf32>
      %132 = arith.addf %125, %131 : vector<1x256xf32>
      %c-1_i32 = arith.constant -1 : i32
      %133 = vector.broadcast %c-1_i32 : i32 to vector<1x256xi32>
      %134 = arith.addi %19, %133 : vector<1x256xi32>
      %c0_i32_73 = arith.constant 0 : i32
      %135 = vector.broadcast %c0_i32_73 : i32 to vector<1x256xi32>
      %136 = arith.cmpi sge, %134, %135 : vector<1x256xi32>
      %c16_i32_74 = arith.constant 16 : i32
      %137 = vector.broadcast %c16_i32_74 : i32 to vector<1x256xi32>
      %138 = arith.cmpi slt, %134, %137 : vector<1x256xi32>
      %139 = arith.andi %136, %138 : vector<1x256xi1>
      %c0_75 = arith.constant 0 : index
      %c2_76 = arith.constant 2 : index
      %140 = vector.load %arg6[%c0_75, %c2_76] : memref<1x358xf32, #tpu.memory_space<vmem>>, vector<1x256xf32>
      %c0_77 = arith.constant 0 : index
      %c2_78 = arith.constant 2 : index
      %141 = memref.load %arg2[%c0_77, %c2_78] : memref<7x7xf32, #tpu.memory_space<smem>>
      %cst_79 = arith.constant 0.000000e+00 : f32
      %142 = vector.broadcast %cst_79 : f32 to vector<1x256xf32>
      %143 = arith.select %139, %140, %142 : vector<1x256xi1>, vector<1x256xf32>
      %144 = vector.broadcast %141 : f32 to vector<1x256xf32>
      %145 = arith.mulf %143, %144 : vector<1x256xf32>
      %146 = arith.addf %132, %145 : vector<1x256xf32>
      %c0_80 = arith.constant 0 : index
      %c18 = arith.constant 18 : index
      %147 = vector.load %arg6[%c0_80, %c18] : memref<1x358xf32, #tpu.memory_space<vmem>>, vector<1x256xf32>
      %c1_81 = arith.constant 1 : index
      %c2_82 = arith.constant 2 : index
      %148 = memref.load %arg2[%c1_81, %c2_82] : memref<7x7xf32, #tpu.memory_space<smem>>
      %cst_83 = arith.constant 0.000000e+00 : f32
      %149 = vector.broadcast %cst_83 : f32 to vector<1x256xf32>
      %150 = arith.select %139, %147, %149 : vector<1x256xi1>, vector<1x256xf32>
      %151 = vector.broadcast %148 : f32 to vector<1x256xf32>
      %152 = arith.mulf %150, %151 : vector<1x256xf32>
      %153 = arith.addf %146, %152 : vector<1x256xf32>
      %c0_84 = arith.constant 0 : index
      %c34 = arith.constant 34 : index
      %154 = vector.load %arg6[%c0_84, %c34] : memref<1x358xf32, #tpu.memory_space<vmem>>, vector<1x256xf32>
      %c2_85 = arith.constant 2 : index
      %c2_86 = arith.constant 2 : index
      %155 = memref.load %arg2[%c2_85, %c2_86] : memref<7x7xf32, #tpu.memory_space<smem>>
      %cst_87 = arith.constant 0.000000e+00 : f32
      %156 = vector.broadcast %cst_87 : f32 to vector<1x256xf32>
      %157 = arith.select %139, %154, %156 : vector<1x256xi1>, vector<1x256xf32>
      %158 = vector.broadcast %155 : f32 to vector<1x256xf32>
      %159 = arith.mulf %157, %158 : vector<1x256xf32>
      %160 = arith.addf %153, %159 : vector<1x256xf32>
      %c0_88 = arith.constant 0 : index
      %c50 = arith.constant 50 : index
      %161 = vector.load %arg6[%c0_88, %c50] : memref<1x358xf32, #tpu.memory_space<vmem>>, vector<1x256xf32>
      %c3_89 = arith.constant 3 : index
      %c2_90 = arith.constant 2 : index
      %162 = memref.load %arg2[%c3_89, %c2_90] : memref<7x7xf32, #tpu.memory_space<smem>>
      %cst_91 = arith.constant 0.000000e+00 : f32
      %163 = vector.broadcast %cst_91 : f32 to vector<1x256xf32>
      %164 = arith.select %139, %161, %163 : vector<1x256xi1>, vector<1x256xf32>
      %165 = vector.broadcast %162 : f32 to vector<1x256xf32>
      %166 = arith.mulf %164, %165 : vector<1x256xf32>
      %167 = arith.addf %160, %166 : vector<1x256xf32>
      %c0_92 = arith.constant 0 : index
      %c66 = arith.constant 66 : index
      %168 = vector.load %arg6[%c0_92, %c66] : memref<1x358xf32, #tpu.memory_space<vmem>>, vector<1x256xf32>
      %c4_93 = arith.constant 4 : index
      %c2_94 = arith.constant 2 : index
      %169 = memref.load %arg2[%c4_93, %c2_94] : memref<7x7xf32, #tpu.memory_space<smem>>
      %cst_95 = arith.constant 0.000000e+00 : f32
      %170 = vector.broadcast %cst_95 : f32 to vector<1x256xf32>
      %171 = arith.select %139, %168, %170 : vector<1x256xi1>, vector<1x256xf32>
      %172 = vector.broadcast %169 : f32 to vector<1x256xf32>
      %173 = arith.mulf %171, %172 : vector<1x256xf32>
      %174 = arith.addf %167, %173 : vector<1x256xf32>
      %c0_96 = arith.constant 0 : index
      %c82 = arith.constant 82 : index
      %175 = vector.load %arg6[%c0_96, %c82] : memref<1x358xf32, #tpu.memory_space<vmem>>, vector<1x256xf32>
      %c5_97 = arith.constant 5 : index
      %c2_98 = arith.constant 2 : index
      %176 = memref.load %arg2[%c5_97, %c2_98] : memref<7x7xf32, #tpu.memory_space<smem>>
      %cst_99 = arith.constant 0.000000e+00 : f32
      %177 = vector.broadcast %cst_99 : f32 to vector<1x256xf32>
      %178 = arith.select %139, %175, %177 : vector<1x256xi1>, vector<1x256xf32>
      %179 = vector.broadcast %176 : f32 to vector<1x256xf32>
      %180 = arith.mulf %178, %179 : vector<1x256xf32>
      %181 = arith.addf %174, %180 : vector<1x256xf32>
      %c0_100 = arith.constant 0 : index
      %c98 = arith.constant 98 : index
      %182 = vector.load %arg6[%c0_100, %c98] : memref<1x358xf32, #tpu.memory_space<vmem>>, vector<1x256xf32>
      %c6_101 = arith.constant 6 : index
      %c2_102 = arith.constant 2 : index
      %183 = memref.load %arg2[%c6_101, %c2_102] : memref<7x7xf32, #tpu.memory_space<smem>>
      %cst_103 = arith.constant 0.000000e+00 : f32
      %184 = vector.broadcast %cst_103 : f32 to vector<1x256xf32>
      %185 = arith.select %139, %182, %184 : vector<1x256xi1>, vector<1x256xf32>
      %186 = vector.broadcast %183 : f32 to vector<1x256xf32>
      %187 = arith.mulf %185, %186 : vector<1x256xf32>
      %188 = arith.addf %181, %187 : vector<1x256xf32>
      %c0_i32_104 = arith.constant 0 : i32
      %189 = vector.broadcast %c0_i32_104 : i32 to vector<1x256xi32>
      %190 = arith.addi %19, %189 : vector<1x256xi32>
      %c0_i32_105 = arith.constant 0 : i32
      %191 = vector.broadcast %c0_i32_105 : i32 to vector<1x256xi32>
      %192 = arith.cmpi sge, %190, %191 : vector<1x256xi32>
      %c16_i32_106 = arith.constant 16 : i32
      %193 = vector.broadcast %c16_i32_106 : i32 to vector<1x256xi32>
      %194 = arith.cmpi slt, %190, %193 : vector<1x256xi32>
      %195 = arith.andi %192, %194 : vector<1x256xi1>
      %c0_107 = arith.constant 0 : index
      %c3_108 = arith.constant 3 : index
      %196 = vector.load %arg6[%c0_107, %c3_108] : memref<1x358xf32, #tpu.memory_space<vmem>>, vector<1x256xf32>
      %c0_109 = arith.constant 0 : index
      %c3_110 = arith.constant 3 : index
      %197 = memref.load %arg2[%c0_109, %c3_110] : memref<7x7xf32, #tpu.memory_space<smem>>
      %cst_111 = arith.constant 0.000000e+00 : f32
      %198 = vector.broadcast %cst_111 : f32 to vector<1x256xf32>
      %199 = arith.select %195, %196, %198 : vector<1x256xi1>, vector<1x256xf32>
      %200 = vector.broadcast %197 : f32 to vector<1x256xf32>
      %201 = arith.mulf %199, %200 : vector<1x256xf32>
      %202 = arith.addf %188, %201 : vector<1x256xf32>
      %c0_112 = arith.constant 0 : index
      %c19 = arith.constant 19 : index
      %203 = vector.load %arg6[%c0_112, %c19] : memref<1x358xf32, #tpu.memory_space<vmem>>, vector<1x256xf32>
      %c1_113 = arith.constant 1 : index
      %c3_114 = arith.constant 3 : index
      %204 = memref.load %arg2[%c1_113, %c3_114] : memref<7x7xf32, #tpu.memory_space<smem>>
      %cst_115 = arith.constant 0.000000e+00 : f32
      %205 = vector.broadcast %cst_115 : f32 to vector<1x256xf32>
      %206 = arith.select %195, %203, %205 : vector<1x256xi1>, vector<1x256xf32>
      %207 = vector.broadcast %204 : f32 to vector<1x256xf32>
      %208 = arith.mulf %206, %207 : vector<1x256xf32>
      %209 = arith.addf %202, %208 : vector<1x256xf32>
      %c0_116 = arith.constant 0 : index
      %c35 = arith.constant 35 : index
      %210 = vector.load %arg6[%c0_116, %c35] : memref<1x358xf32, #tpu.memory_space<vmem>>, vector<1x256xf32>
      %c2_117 = arith.constant 2 : index
      %c3_118 = arith.constant 3 : index
      %211 = memref.load %arg2[%c2_117, %c3_118] : memref<7x7xf32, #tpu.memory_space<smem>>
      %cst_119 = arith.constant 0.000000e+00 : f32
      %212 = vector.broadcast %cst_119 : f32 to vector<1x256xf32>
      %213 = arith.select %195, %210, %212 : vector<1x256xi1>, vector<1x256xf32>
      %214 = vector.broadcast %211 : f32 to vector<1x256xf32>
      %215 = arith.mulf %213, %214 : vector<1x256xf32>
      %216 = arith.addf %209, %215 : vector<1x256xf32>
      %c0_120 = arith.constant 0 : index
      %c51_121 = arith.constant 51 : index
      %217 = vector.load %arg6[%c0_120, %c51_121] : memref<1x358xf32, #tpu.memory_space<vmem>>, vector<1x256xf32>
      %c3_122 = arith.constant 3 : index
      %c3_123 = arith.constant 3 : index
      %218 = memref.load %arg2[%c3_122, %c3_123] : memref<7x7xf32, #tpu.memory_space<smem>>
      %cst_124 = arith.constant 0.000000e+00 : f32
      %219 = vector.broadcast %cst_124 : f32 to vector<1x256xf32>
      %220 = arith.select %195, %217, %219 : vector<1x256xi1>, vector<1x256xf32>
      %221 = vector.broadcast %218 : f32 to vector<1x256xf32>
      %222 = arith.mulf %220, %221 : vector<1x256xf32>
      %223 = arith.addf %216, %222 : vector<1x256xf32>
      %c0_125 = arith.constant 0 : index
      %c67 = arith.constant 67 : index
      %224 = vector.load %arg6[%c0_125, %c67] : memref<1x358xf32, #tpu.memory_space<vmem>>, vector<1x256xf32>
      %c4_126 = arith.constant 4 : index
      %c3_127 = arith.constant 3 : index
      %225 = memref.load %arg2[%c4_126, %c3_127] : memref<7x7xf32, #tpu.memory_space<smem>>
      %cst_128 = arith.constant 0.000000e+00 : f32
      %226 = vector.broadcast %cst_128 : f32 to vector<1x256xf32>
      %227 = arith.select %195, %224, %226 : vector<1x256xi1>, vector<1x256xf32>
      %228 = vector.broadcast %225 : f32 to vector<1x256xf32>
      %229 = arith.mulf %227, %228 : vector<1x256xf32>
      %230 = arith.addf %223, %229 : vector<1x256xf32>
      %c0_129 = arith.constant 0 : index
      %c83 = arith.constant 83 : index
      %231 = vector.load %arg6[%c0_129, %c83] : memref<1x358xf32, #tpu.memory_space<vmem>>, vector<1x256xf32>
      %c5_130 = arith.constant 5 : index
      %c3_131 = arith.constant 3 : index
      %232 = memref.load %arg2[%c5_130, %c3_131] : memref<7x7xf32, #tpu.memory_space<smem>>
      %cst_132 = arith.constant 0.000000e+00 : f32
      %233 = vector.broadcast %cst_132 : f32 to vector<1x256xf32>
      %234 = arith.select %195, %231, %233 : vector<1x256xi1>, vector<1x256xf32>
      %235 = vector.broadcast %232 : f32 to vector<1x256xf32>
      %236 = arith.mulf %234, %235 : vector<1x256xf32>
      %237 = arith.addf %230, %236 : vector<1x256xf32>
      %c0_133 = arith.constant 0 : index
      %c99 = arith.constant 99 : index
      %238 = vector.load %arg6[%c0_133, %c99] : memref<1x358xf32, #tpu.memory_space<vmem>>, vector<1x256xf32>
      %c6_134 = arith.constant 6 : index
      %c3_135 = arith.constant 3 : index
      %239 = memref.load %arg2[%c6_134, %c3_135] : memref<7x7xf32, #tpu.memory_space<smem>>
      %cst_136 = arith.constant 0.000000e+00 : f32
      %240 = vector.broadcast %cst_136 : f32 to vector<1x256xf32>
      %241 = arith.select %195, %238, %240 : vector<1x256xi1>, vector<1x256xf32>
      %242 = vector.broadcast %239 : f32 to vector<1x256xf32>
      %243 = arith.mulf %241, %242 : vector<1x256xf32>
      %244 = arith.addf %237, %243 : vector<1x256xf32>
      %c1_i32 = arith.constant 1 : i32
      %245 = vector.broadcast %c1_i32 : i32 to vector<1x256xi32>
      %246 = arith.addi %19, %245 : vector<1x256xi32>
      %c0_i32_137 = arith.constant 0 : i32
      %247 = vector.broadcast %c0_i32_137 : i32 to vector<1x256xi32>
      %248 = arith.cmpi sge, %246, %247 : vector<1x256xi32>
      %c16_i32_138 = arith.constant 16 : i32
      %249 = vector.broadcast %c16_i32_138 : i32 to vector<1x256xi32>
      %250 = arith.cmpi slt, %246, %249 : vector<1x256xi32>
      %251 = arith.andi %248, %250 : vector<1x256xi1>
      %c0_139 = arith.constant 0 : index
      %c4_140 = arith.constant 4 : index
      %252 = vector.load %arg6[%c0_139, %c4_140] : memref<1x358xf32, #tpu.memory_space<vmem>>, vector<1x256xf32>
      %c0_141 = arith.constant 0 : index
      %c4_142 = arith.constant 4 : index
      %253 = memref.load %arg2[%c0_141, %c4_142] : memref<7x7xf32, #tpu.memory_space<smem>>
      %cst_143 = arith.constant 0.000000e+00 : f32
      %254 = vector.broadcast %cst_143 : f32 to vector<1x256xf32>
      %255 = arith.select %251, %252, %254 : vector<1x256xi1>, vector<1x256xf32>
      %256 = vector.broadcast %253 : f32 to vector<1x256xf32>
      %257 = arith.mulf %255, %256 : vector<1x256xf32>
      %258 = arith.addf %244, %257 : vector<1x256xf32>
      %c0_144 = arith.constant 0 : index
      %c20 = arith.constant 20 : index
      %259 = vector.load %arg6[%c0_144, %c20] : memref<1x358xf32, #tpu.memory_space<vmem>>, vector<1x256xf32>
      %c1_145 = arith.constant 1 : index
      %c4_146 = arith.constant 4 : index
      %260 = memref.load %arg2[%c1_145, %c4_146] : memref<7x7xf32, #tpu.memory_space<smem>>
      %cst_147 = arith.constant 0.000000e+00 : f32
      %261 = vector.broadcast %cst_147 : f32 to vector<1x256xf32>
      %262 = arith.select %251, %259, %261 : vector<1x256xi1>, vector<1x256xf32>
      %263 = vector.broadcast %260 : f32 to vector<1x256xf32>
      %264 = arith.mulf %262, %263 : vector<1x256xf32>
      %265 = arith.addf %258, %264 : vector<1x256xf32>
      %c0_148 = arith.constant 0 : index
      %c36 = arith.constant 36 : index
      %266 = vector.load %arg6[%c0_148, %c36] : memref<1x358xf32, #tpu.memory_space<vmem>>, vector<1x256xf32>
      %c2_149 = arith.constant 2 : index
      %c4_150 = arith.constant 4 : index
      %267 = memref.load %arg2[%c2_149, %c4_150] : memref<7x7xf32, #tpu.memory_space<smem>>
      %cst_151 = arith.constant 0.000000e+00 : f32
      %268 = vector.broadcast %cst_151 : f32 to vector<1x256xf32>
      %269 = arith.select %251, %266, %268 : vector<1x256xi1>, vector<1x256xf32>
      %270 = vector.broadcast %267 : f32 to vector<1x256xf32>
      %271 = arith.mulf %269, %270 : vector<1x256xf32>
      %272 = arith.addf %265, %271 : vector<1x256xf32>
      %c0_152 = arith.constant 0 : index
      %c52 = arith.constant 52 : index
      %273 = vector.load %arg6[%c0_152, %c52] : memref<1x358xf32, #tpu.memory_space<vmem>>, vector<1x256xf32>
      %c3_153 = arith.constant 3 : index
      %c4_154 = arith.constant 4 : index
      %274 = memref.load %arg2[%c3_153, %c4_154] : memref<7x7xf32, #tpu.memory_space<smem>>
      %cst_155 = arith.constant 0.000000e+00 : f32
      %275 = vector.broadcast %cst_155 : f32 to vector<1x256xf32>
      %276 = arith.select %251, %273, %275 : vector<1x256xi1>, vector<1x256xf32>
      %277 = vector.broadcast %274 : f32 to vector<1x256xf32>
      %278 = arith.mulf %276, %277 : vector<1x256xf32>
      %279 = arith.addf %272, %278 : vector<1x256xf32>
      %c0_156 = arith.constant 0 : index
      %c68 = arith.constant 68 : index
      %280 = vector.load %arg6[%c0_156, %c68] : memref<1x358xf32, #tpu.memory_space<vmem>>, vector<1x256xf32>
      %c4_157 = arith.constant 4 : index
      %c4_158 = arith.constant 4 : index
      %281 = memref.load %arg2[%c4_157, %c4_158] : memref<7x7xf32, #tpu.memory_space<smem>>
      %cst_159 = arith.constant 0.000000e+00 : f32
      %282 = vector.broadcast %cst_159 : f32 to vector<1x256xf32>
      %283 = arith.select %251, %280, %282 : vector<1x256xi1>, vector<1x256xf32>
      %284 = vector.broadcast %281 : f32 to vector<1x256xf32>
      %285 = arith.mulf %283, %284 : vector<1x256xf32>
      %286 = arith.addf %279, %285 : vector<1x256xf32>
      %c0_160 = arith.constant 0 : index
      %c84 = arith.constant 84 : index
      %287 = vector.load %arg6[%c0_160, %c84] : memref<1x358xf32, #tpu.memory_space<vmem>>, vector<1x256xf32>
      %c5_161 = arith.constant 5 : index
      %c4_162 = arith.constant 4 : index
      %288 = memref.load %arg2[%c5_161, %c4_162] : memref<7x7xf32, #tpu.memory_space<smem>>
      %cst_163 = arith.constant 0.000000e+00 : f32
      %289 = vector.broadcast %cst_163 : f32 to vector<1x256xf32>
      %290 = arith.select %251, %287, %289 : vector<1x256xi1>, vector<1x256xf32>
      %291 = vector.broadcast %288 : f32 to vector<1x256xf32>
      %292 = arith.mulf %290, %291 : vector<1x256xf32>
      %293 = arith.addf %286, %292 : vector<1x256xf32>
      %c0_164 = arith.constant 0 : index
      %c100 = arith.constant 100 : index
      %294 = vector.load %arg6[%c0_164, %c100] : memref<1x358xf32, #tpu.memory_space<vmem>>, vector<1x256xf32>
      %c6_165 = arith.constant 6 : index
      %c4_166 = arith.constant 4 : index
      %295 = memref.load %arg2[%c6_165, %c4_166] : memref<7x7xf32, #tpu.memory_space<smem>>
      %cst_167 = arith.constant 0.000000e+00 : f32
      %296 = vector.broadcast %cst_167 : f32 to vector<1x256xf32>
      %297 = arith.select %251, %294, %296 : vector<1x256xi1>, vector<1x256xf32>
      %298 = vector.broadcast %295 : f32 to vector<1x256xf32>
      %299 = arith.mulf %297, %298 : vector<1x256xf32>
      %300 = arith.addf %293, %299 : vector<1x256xf32>
      %c2_i32 = arith.constant 2 : i32
      %301 = vector.broadcast %c2_i32 : i32 to vector<1x256xi32>
      %302 = arith.addi %19, %301 : vector<1x256xi32>
      %c0_i32_168 = arith.constant 0 : i32
      %303 = vector.broadcast %c0_i32_168 : i32 to vector<1x256xi32>
      %304 = arith.cmpi sge, %302, %303 : vector<1x256xi32>
      %c16_i32_169 = arith.constant 16 : i32
      %305 = vector.broadcast %c16_i32_169 : i32 to vector<1x256xi32>
      %306 = arith.cmpi slt, %302, %305 : vector<1x256xi32>
      %307 = arith.andi %304, %306 : vector<1x256xi1>
      %c0_170 = arith.constant 0 : index
      %c5_171 = arith.constant 5 : index
      %308 = vector.load %arg6[%c0_170, %c5_171] : memref<1x358xf32, #tpu.memory_space<vmem>>, vector<1x256xf32>
      %c0_172 = arith.constant 0 : index
      %c5_173 = arith.constant 5 : index
      %309 = memref.load %arg2[%c0_172, %c5_173] : memref<7x7xf32, #tpu.memory_space<smem>>
      %cst_174 = arith.constant 0.000000e+00 : f32
      %310 = vector.broadcast %cst_174 : f32 to vector<1x256xf32>
      %311 = arith.select %307, %308, %310 : vector<1x256xi1>, vector<1x256xf32>
      %312 = vector.broadcast %309 : f32 to vector<1x256xf32>
      %313 = arith.mulf %311, %312 : vector<1x256xf32>
      %314 = arith.addf %300, %313 : vector<1x256xf32>
      %c0_175 = arith.constant 0 : index
      %c21 = arith.constant 21 : index
      %315 = vector.load %arg6[%c0_175, %c21] : memref<1x358xf32, #tpu.memory_space<vmem>>, vector<1x256xf32>
      %c1_176 = arith.constant 1 : index
      %c5_177 = arith.constant 5 : index
      %316 = memref.load %arg2[%c1_176, %c5_177] : memref<7x7xf32, #tpu.memory_space<smem>>
      %cst_178 = arith.constant 0.000000e+00 : f32
      %317 = vector.broadcast %cst_178 : f32 to vector<1x256xf32>
      %318 = arith.select %307, %315, %317 : vector<1x256xi1>, vector<1x256xf32>
      %319 = vector.broadcast %316 : f32 to vector<1x256xf32>
      %320 = arith.mulf %318, %319 : vector<1x256xf32>
      %321 = arith.addf %314, %320 : vector<1x256xf32>
      %c0_179 = arith.constant 0 : index
      %c37 = arith.constant 37 : index
      %322 = vector.load %arg6[%c0_179, %c37] : memref<1x358xf32, #tpu.memory_space<vmem>>, vector<1x256xf32>
      %c2_180 = arith.constant 2 : index
      %c5_181 = arith.constant 5 : index
      %323 = memref.load %arg2[%c2_180, %c5_181] : memref<7x7xf32, #tpu.memory_space<smem>>
      %cst_182 = arith.constant 0.000000e+00 : f32
      %324 = vector.broadcast %cst_182 : f32 to vector<1x256xf32>
      %325 = arith.select %307, %322, %324 : vector<1x256xi1>, vector<1x256xf32>
      %326 = vector.broadcast %323 : f32 to vector<1x256xf32>
      %327 = arith.mulf %325, %326 : vector<1x256xf32>
      %328 = arith.addf %321, %327 : vector<1x256xf32>
      %c0_183 = arith.constant 0 : index
      %c53 = arith.constant 53 : index
      %329 = vector.load %arg6[%c0_183, %c53] : memref<1x358xf32, #tpu.memory_space<vmem>>, vector<1x256xf32>
      %c3_184 = arith.constant 3 : index
      %c5_185 = arith.constant 5 : index
      %330 = memref.load %arg2[%c3_184, %c5_185] : memref<7x7xf32, #tpu.memory_space<smem>>
      %cst_186 = arith.constant 0.000000e+00 : f32
      %331 = vector.broadcast %cst_186 : f32 to vector<1x256xf32>
      %332 = arith.select %307, %329, %331 : vector<1x256xi1>, vector<1x256xf32>
      %333 = vector.broadcast %330 : f32 to vector<1x256xf32>
      %334 = arith.mulf %332, %333 : vector<1x256xf32>
      %335 = arith.addf %328, %334 : vector<1x256xf32>
      %c0_187 = arith.constant 0 : index
      %c69 = arith.constant 69 : index
      %336 = vector.load %arg6[%c0_187, %c69] : memref<1x358xf32, #tpu.memory_space<vmem>>, vector<1x256xf32>
      %c4_188 = arith.constant 4 : index
      %c5_189 = arith.constant 5 : index
      %337 = memref.load %arg2[%c4_188, %c5_189] : memref<7x7xf32, #tpu.memory_space<smem>>
      %cst_190 = arith.constant 0.000000e+00 : f32
      %338 = vector.broadcast %cst_190 : f32 to vector<1x256xf32>
      %339 = arith.select %307, %336, %338 : vector<1x256xi1>, vector<1x256xf32>
      %340 = vector.broadcast %337 : f32 to vector<1x256xf32>
      %341 = arith.mulf %339, %340 : vector<1x256xf32>
      %342 = arith.addf %335, %341 : vector<1x256xf32>
      %c0_191 = arith.constant 0 : index
      %c85 = arith.constant 85 : index
      %343 = vector.load %arg6[%c0_191, %c85] : memref<1x358xf32, #tpu.memory_space<vmem>>, vector<1x256xf32>
      %c5_192 = arith.constant 5 : index
      %c5_193 = arith.constant 5 : index
      %344 = memref.load %arg2[%c5_192, %c5_193] : memref<7x7xf32, #tpu.memory_space<smem>>
      %cst_194 = arith.constant 0.000000e+00 : f32
      %345 = vector.broadcast %cst_194 : f32 to vector<1x256xf32>
      %346 = arith.select %307, %343, %345 : vector<1x256xi1>, vector<1x256xf32>
      %347 = vector.broadcast %344 : f32 to vector<1x256xf32>
      %348 = arith.mulf %346, %347 : vector<1x256xf32>
      %349 = arith.addf %342, %348 : vector<1x256xf32>
      %c0_195 = arith.constant 0 : index
      %c101 = arith.constant 101 : index
      %350 = vector.load %arg6[%c0_195, %c101] : memref<1x358xf32, #tpu.memory_space<vmem>>, vector<1x256xf32>
      %c6_196 = arith.constant 6 : index
      %c5_197 = arith.constant 5 : index
      %351 = memref.load %arg2[%c6_196, %c5_197] : memref<7x7xf32, #tpu.memory_space<smem>>
      %cst_198 = arith.constant 0.000000e+00 : f32
      %352 = vector.broadcast %cst_198 : f32 to vector<1x256xf32>
      %353 = arith.select %307, %350, %352 : vector<1x256xi1>, vector<1x256xf32>
      %354 = vector.broadcast %351 : f32 to vector<1x256xf32>
      %355 = arith.mulf %353, %354 : vector<1x256xf32>
      %356 = arith.addf %349, %355 : vector<1x256xf32>
      %c3_i32 = arith.constant 3 : i32
      %357 = vector.broadcast %c3_i32 : i32 to vector<1x256xi32>
      %358 = arith.addi %19, %357 : vector<1x256xi32>
      %c0_i32_199 = arith.constant 0 : i32
      %359 = vector.broadcast %c0_i32_199 : i32 to vector<1x256xi32>
      %360 = arith.cmpi sge, %358, %359 : vector<1x256xi32>
      %c16_i32_200 = arith.constant 16 : i32
      %361 = vector.broadcast %c16_i32_200 : i32 to vector<1x256xi32>
      %362 = arith.cmpi slt, %358, %361 : vector<1x256xi32>
      %363 = arith.andi %360, %362 : vector<1x256xi1>
      %c0_201 = arith.constant 0 : index
      %c6_202 = arith.constant 6 : index
      %364 = vector.load %arg6[%c0_201, %c6_202] : memref<1x358xf32, #tpu.memory_space<vmem>>, vector<1x256xf32>
      %c0_203 = arith.constant 0 : index
      %c6_204 = arith.constant 6 : index
      %365 = memref.load %arg2[%c0_203, %c6_204] : memref<7x7xf32, #tpu.memory_space<smem>>
      %cst_205 = arith.constant 0.000000e+00 : f32
      %366 = vector.broadcast %cst_205 : f32 to vector<1x256xf32>
      %367 = arith.select %363, %364, %366 : vector<1x256xi1>, vector<1x256xf32>
      %368 = vector.broadcast %365 : f32 to vector<1x256xf32>
      %369 = arith.mulf %367, %368 : vector<1x256xf32>
      %370 = arith.addf %356, %369 : vector<1x256xf32>
      %c0_206 = arith.constant 0 : index
      %c22 = arith.constant 22 : index
      %371 = vector.load %arg6[%c0_206, %c22] : memref<1x358xf32, #tpu.memory_space<vmem>>, vector<1x256xf32>
      %c1_207 = arith.constant 1 : index
      %c6_208 = arith.constant 6 : index
      %372 = memref.load %arg2[%c1_207, %c6_208] : memref<7x7xf32, #tpu.memory_space<smem>>
      %cst_209 = arith.constant 0.000000e+00 : f32
      %373 = vector.broadcast %cst_209 : f32 to vector<1x256xf32>
      %374 = arith.select %363, %371, %373 : vector<1x256xi1>, vector<1x256xf32>
      %375 = vector.broadcast %372 : f32 to vector<1x256xf32>
      %376 = arith.mulf %374, %375 : vector<1x256xf32>
      %377 = arith.addf %370, %376 : vector<1x256xf32>
      %c0_210 = arith.constant 0 : index
      %c38 = arith.constant 38 : index
      %378 = vector.load %arg6[%c0_210, %c38] : memref<1x358xf32, #tpu.memory_space<vmem>>, vector<1x256xf32>
      %c2_211 = arith.constant 2 : index
      %c6_212 = arith.constant 6 : index
      %379 = memref.load %arg2[%c2_211, %c6_212] : memref<7x7xf32, #tpu.memory_space<smem>>
      %cst_213 = arith.constant 0.000000e+00 : f32
      %380 = vector.broadcast %cst_213 : f32 to vector<1x256xf32>
      %381 = arith.select %363, %378, %380 : vector<1x256xi1>, vector<1x256xf32>
      %382 = vector.broadcast %379 : f32 to vector<1x256xf32>
      %383 = arith.mulf %381, %382 : vector<1x256xf32>
      %384 = arith.addf %377, %383 : vector<1x256xf32>
      %c0_214 = arith.constant 0 : index
      %c54 = arith.constant 54 : index
      %385 = vector.load %arg6[%c0_214, %c54] : memref<1x358xf32, #tpu.memory_space<vmem>>, vector<1x256xf32>
      %c3_215 = arith.constant 3 : index
      %c6_216 = arith.constant 6 : index
      %386 = memref.load %arg2[%c3_215, %c6_216] : memref<7x7xf32, #tpu.memory_space<smem>>
      %cst_217 = arith.constant 0.000000e+00 : f32
      %387 = vector.broadcast %cst_217 : f32 to vector<1x256xf32>
      %388 = arith.select %363, %385, %387 : vector<1x256xi1>, vector<1x256xf32>
      %389 = vector.broadcast %386 : f32 to vector<1x256xf32>
      %390 = arith.mulf %388, %389 : vector<1x256xf32>
      %391 = arith.addf %384, %390 : vector<1x256xf32>
      %c0_218 = arith.constant 0 : index
      %c70 = arith.constant 70 : index
      %392 = vector.load %arg6[%c0_218, %c70] : memref<1x358xf32, #tpu.memory_space<vmem>>, vector<1x256xf32>
      %c4_219 = arith.constant 4 : index
      %c6_220 = arith.constant 6 : index
      %393 = memref.load %arg2[%c4_219, %c6_220] : memref<7x7xf32, #tpu.memory_space<smem>>
      %cst_221 = arith.constant 0.000000e+00 : f32
      %394 = vector.broadcast %cst_221 : f32 to vector<1x256xf32>
      %395 = arith.select %363, %392, %394 : vector<1x256xi1>, vector<1x256xf32>
      %396 = vector.broadcast %393 : f32 to vector<1x256xf32>
      %397 = arith.mulf %395, %396 : vector<1x256xf32>
      %398 = arith.addf %391, %397 : vector<1x256xf32>
      %c0_222 = arith.constant 0 : index
      %c86 = arith.constant 86 : index
      %399 = vector.load %arg6[%c0_222, %c86] : memref<1x358xf32, #tpu.memory_space<vmem>>, vector<1x256xf32>
      %c5_223 = arith.constant 5 : index
      %c6_224 = arith.constant 6 : index
      %400 = memref.load %arg2[%c5_223, %c6_224] : memref<7x7xf32, #tpu.memory_space<smem>>
      %cst_225 = arith.constant 0.000000e+00 : f32
      %401 = vector.broadcast %cst_225 : f32 to vector<1x256xf32>
      %402 = arith.select %363, %399, %401 : vector<1x256xi1>, vector<1x256xf32>
      %403 = vector.broadcast %400 : f32 to vector<1x256xf32>
      %404 = arith.mulf %402, %403 : vector<1x256xf32>
      %405 = arith.addf %398, %404 : vector<1x256xf32>
      %c0_226 = arith.constant 0 : index
      %c102 = arith.constant 102 : index
      %406 = vector.load %arg6[%c0_226, %c102] : memref<1x358xf32, #tpu.memory_space<vmem>>, vector<1x256xf32>
      %c6_227 = arith.constant 6 : index
      %c6_228 = arith.constant 6 : index
      %407 = memref.load %arg2[%c6_227, %c6_228] : memref<7x7xf32, #tpu.memory_space<smem>>
      %cst_229 = arith.constant 0.000000e+00 : f32
      %408 = vector.broadcast %cst_229 : f32 to vector<1x256xf32>
      %409 = arith.select %363, %406, %408 : vector<1x256xi1>, vector<1x256xf32>
      %410 = vector.broadcast %407 : f32 to vector<1x256xf32>
      %411 = arith.mulf %409, %410 : vector<1x256xf32>
      %412 = arith.addf %405, %411 : vector<1x256xf32>
      %413 = arith.negf %412 : vector<1x256xf32>
      %414 = math.exp %413 : vector<1x256xf32>
      %cst_230 = arith.constant 1.000000e+00 : f32
      %415 = vector.broadcast %cst_230 : f32 to vector<1x256xf32>
      %416 = arith.addf %415, %414 : vector<1x256xf32>
      %417 = arith.divf %415, %416 : vector<1x256xf32>
      %c0_231 = arith.constant 0 : index
      %c0_232 = arith.constant 0 : index
      %c0_233 = arith.constant 0 : index
      %418 = vector.load %arg5[%c0_231, %c0_232, %c0_233] : memref<1x1x256xf32, #tpu.memory_space<vmem>>, vector<1x1x256xf32>
      %419 = vector.shape_cast %418 : vector<1x1x256xf32> to vector<1x256xf32>
      %420 = vector.shape_cast %417 : vector<1x256xf32> to vector<1x1x256xf32>
      tpu.vector_store %arg5[%c0_231, %c0_232, %c0_233], %420 {strides = array<i32>} : memref<1x1x256xf32, #tpu.memory_space<vmem>>, vector<1x1x256xf32>,
    } else {
    }
    return
  }
  func.func @transform_0(%arg0: i32, %arg1: i32) -> (i32, i32) {
    %c0_i32 = arith.constant 0 : i32
    %c0_i32_0 = arith.constant 0 : i32
    %c0_i32_1 = arith.constant 0 : i32
    return %c0_i32, %c0_i32_0 : i32, i32
  }
  func.func @transform_1(%arg0: i32, %arg1: i32) -> (i32, i32) {
    %c0_i32 = arith.constant 0 : i32
    %c0_i32_0 = arith.constant 0 : i32
    %c0_i32_1 = arith.constant 0 : i32
    return %c0_i32, %c0_i32_0 : i32, i32
  }
  func.func @transform_2(%arg0: i32, %arg1: i32) -> (i32, i32, i32) {
    %c0_i32 = arith.constant 0 : i32
    %c0_i32_0 = arith.constant 0 : i32
    return %arg0, %arg1, %c0_i32 : i32, i32, i32
  }
  func.func @transform_3(%arg0: i32, %arg1: i32) -> (i32, i32, i32) {
    %c0_i32 = arith.constant 0 : i32
    %c0_i32_0 = arith.constant 0 : i32
    %c0_i32_1 = arith.constant 0 : i32
    return %arg0, %c0_i32, %c0_i32_0 : i32, i32, i32
  }
}

</mosaic_0001>

<llo_original>
// kernel: tpu_custom_call.1
$region0: #{tpu_custom_call.1}
  #allocation0 [shape = 'u32[]', space=smem, size = 0x4, offset = 0x4, fixed_abs, tag = 'smem constant byte address 0x4 - core index']
  #allocation1 [shape = 'u32[144,128]{1,0:T(1,128)}', space=vmem, size = 0x12000, scoped, tag = 'internal scratch']
  #allocation2 [shape = 'f32[1,358]{1,0:T(1,128)}', space=vmem, size = 0x600, scoped, tag = 'scratch operand']
  %s0 = inlined_call_operand.hbm [shape: f32[7,7], index: 0, kind: input, shape index: {}]
  %s1 = inlined_call_operand.vmem [shape: s32[1,256], index: 1, kind: input, shape index: {}]
  %s2 = inlined_call_operand.hbm [shape: f32[2,4,256], index: 2, kind: input, shape index: {}]
  %s3 = inlined_call_operand.hbm [shape: f32[2,1,256], index: 3, kind: output, shape index: {}]
  %s4 = sld [smem:[#allocation0]]
  $region65: #{tpu_custom_call.1} parent=0
    _
  %s6 = ssub.s32 1, %s4
  %s7 = scalar_select 0, %s6, %s4
  $region1: #{tpu_custom_call.1} parent=0
    #allocation3 [shape = 'u8[4096]{0}', space=smem, size = 0x1000, scoped, tag = 'input window, operand 0, single buffered']
    #allocation4 [shape = 's32[2]{0}', space=sflag, size = 0x8, scoped, tag = 'scoped memory for tpu_custom_call.1']
    #allocation5 [shape = 's32[2]{0}', space=sflag, size = 0x8, scoped, tag = 'scoped memory for tpu_custom_call.1']
    #allocation6 [shape = 's32[2]{0}', space=sflag, size = 0x8, scoped, tag = 'scoped memory for tpu_custom_call.1']
    #allocation7 [shape = 'u8[8192]{0}', space=vmem, size = 0x2000, scoped, tag = 'input window, operand 2']
    #allocation8 [shape = 'u8[2048]{0}', space=vmem, size = 0x800, scoped, tag = 'output window, operand 0']
    %8 = vsyncpa [#allocation6], 0
    %9 = vsyncpa [#allocation4], 0
    %s10 = scalar_lea.sflag [#allocation4], 1
    %11 = vsyncpa %s10, 0
    %12 = vsyncpa [#allocation5], 0
    %s13 = scalar_lea.sflag [#allocation5], 1
    %14 = vsyncpa %s13, 0
    loop: start=0, step=1, limit=4
    $region2: #{tpu_custom_call.1} parent=1 // loop_pre_header
      _
    $region3: #{tpu_custom_call.1} parent=1 // loop_header
      %s16 = sphi 0, %s20
      %p17 = scmp.ge.s32.totalorder %s16, 4
      %s23 = sphi 0, %s35
      %s24 = sphi 0, %s31
      %s25 = sphi 0, %s23
      %s26 = sphi 0, %s24
      %s27 = sphi 0, %s25
      %s28 = sphi 0, %s26
      %s36 = sphi 0, %s36
      %s38 = sphi 0, %s36
      %s39 = sphi 0, %s38
      %s53 = sphi 0, %s39
      %s57 = sphi 0, %s57
      %s59 = sphi 0, %s57
      %s60 = sphi 0, %s59
      %s74 = sphi 0, %s60
      %s82 = sphi 0, %s84
      %s85 = sphi 0, %s82
      %s86 = sphi 0, %s85
      %s102 = sphi 0, %s86
      %s108 = sphi 0, %s110
      %s111 = sphi 0, %s108
      %s112 = sphi 0, %s111
      %s128 = sphi 0, %s112
    $region4: #{tpu_custom_call.1} parent=1 // loop_header_branch
      %19 = sbr.rel (%p17) target = $region8
    $region5: #{tpu_custom_call.1} parent=1 // loop_body
      %s21 = ssub.s32 %s16, 1
      %s22 = ssub.s32 %s16, 2
      %s29 = sadd.s32 1, %s24
      %p30 = scmp.ge.s32.totalorder %s29, 1
      %s31 = scalar_select %p30, 0, %s29
      %s32 = sadd.s32 1, %s23
      %s33 = scalar_select %p30, %s32, %s23
      %p34 = scmp.ge.s32.totalorder %s33, 2
      %s35 = scalar_select %p34, 0, %s33
      %s37 = sadd.s32 %s36, 1
      %p40 = scmp.eq.s32.totalorder %s16, 1
      %p41 = scmp.ne.s32.totalorder %s36, %s38
      %p42 = scmp.eq.s32.totalorder %s16, 0
      %p43 = por %p41, %p42
      %p44 = scmp.ne.s32.totalorder %s36, %s38
      %p45 = scmp.eq.s32.totalorder %s21, 1
      %p46 = por %p44, %p45
      %p47 = scmp.ne.s32.totalorder %s38, %s39
      %p48 = scmp.eq.s32.totalorder %s21, 0
      %p49 = por %p47, %p48
      %p50 = scmp.ne.s32.totalorder %s38, %s39
      %p51 = scmp.eq.s32.totalorder %s22, 1
      %p52 = por %p50, %p51
      %p54 = scmp.ne.s32.totalorder %s39, %s53
      %p55 = scmp.eq.s32.totalorder %s22, 0
      %p56 = por %p54, %p55
      %s58 = sadd.s32 %s57, 1
      %p61 = scmp.eq.s32.totalorder %s16, 1
      %p62 = scmp.ne.s32.totalorder %s57, %s59
      %p63 = scmp.eq.s32.totalorder %s16, 0
      %p64 = por %p62, %p63
      %p65 = scmp.ne.s32.totalorder %s57, %s59
      %p66 = scmp.eq.s32.totalorder %s21, 1
      %p67 = por %p65, %p66
      %p68 = scmp.ne.s32.totalorder %s59, %s60
      %p69 = scmp.eq.s32.totalorder %s21, 0
      %p70 = por %p68, %p69
      %p71 = scmp.ne.s32.totalorder %s59, %s60
      %p72 = scmp.eq.s32.totalorder %s22, 1
      %p73 = por %p71, %p72
      %p75 = scmp.ne.s32.totalorder %s60, %s74
      %p76 = scmp.eq.s32.totalorder %s22, 0
      %p77 = por %p75, %p76
      %s78 = ssub.s32 %s23, %s35
      %s79 = ssub.s32 %s24, %s31
      %s80 = sor.u32 %s78, %s79
      %p81 = scmp.eq.s32.totalorder %s80, 0
      %s83 = sadd.s32 %s82, 1
      %s84 = scalar_select %p81, %s82, %s83
      %p87 = pneg %p81
      %p88 = scmp.eq.s32.totalorder %s16, 1
      %p89 = por %p87, %p88
      %p90 = scmp.ne.s32.totalorder %s82, %s85
      %p91 = scmp.eq.s32.totalorder %s16, 0
      %p92 = por %p90, %p91
      %p93 = scmp.ne.s32.totalorder %s82, %s85
      %p94 = scmp.eq.s32.totalorder %s21, 1
      %p95 = por %p93, %p94
      %p96 = scmp.ne.s32.totalorder %s85, %s86
      %p97 = scmp.eq.s32.totalorder %s21, 0
      %p98 = por %p96, %p97
      %p99 = scmp.ne.s32.totalorder %s85, %s86
      %p100 = scmp.eq.s32.totalorder %s22, 1
      %p101 = por %p99, %p100
      %p103 = scmp.ne.s32.totalorder %s86, %s102
      %p104 = scmp.eq.s32.totalorder %s22, 0
      %p105 = por %p103, %p104
      %s106 = ssub.s32 %s23, %s35
      %p107 = scmp.eq.s32.totalorder %s106, 0
      %s109 = sadd.s32 %s108, 1
      %s110 = scalar_select %p107, %s108, %s109
      %p113 = pneg %p107
      %p114 = scmp.eq.s32.totalorder %s16, 1
      %p115 = por %p113, %p114
      %p116 = scmp.ne.s32.totalorder %s108, %s111
      %p117 = scmp.eq.s32.totalorder %s16, 0
      %p118 = por %p116, %p117
      %p119 = scmp.ne.s32.totalorder %s108, %s111
      %p120 = scmp.eq.s32.totalorder %s21, 1
      %p121 = por %p119, %p120
      %p122 = scmp.ne.s32.totalorder %s111, %s112
      %p123 = scmp.eq.s32.totalorder %s21, 0
      %p124 = por %p122, %p123
      %p125 = scmp.ne.s32.totalorder %s111, %s112
      %p126 = scmp.eq.s32.totalorder %s22, 1
      %p127 = por %p125, %p126
      %p129 = scmp.ne.s32.totalorder %s112, %s128
      %p130 = scmp.eq.s32.totalorder %s22, 0
      %p131 = por %p129, %p130
      %p132 = scmp.le.s32.totalorder 1, %s16
      %p133 = scmp.lt.s32.totalorder %s16, 3
      %p134 = pnand %p132, %p133
      %p135 = pneg %p134
      // Predicated region
      $region9: #{tpu_custom_call.1} parent=5 // pred_check
        _
      $region10: #{tpu_custom_call.1} parent=5 // pred_check_branch
        %137 = sbr.rel (%p134) target = $region12
      $region11: #{tpu_custom_call.1} parent=5 // pred_region
        %s138 = ssub.s32 %s16, 1
        // Predicated region
        $region13: #{tpu_custom_call.1} parent=11 // pred_check
          %p139 = pneg %p49
        $region14: #{tpu_custom_call.1} parent=11 // pred_check_branch
          %141 = sbr.rel (%p139) target = $region16
        $region15: #{tpu_custom_call.1} parent=11 // pred_region
          %s143 = ssub.s32 128, 128
          %144 = vsyncadd [#allocation6], %s143
          %147 = dma.hbm_to_smem %s0, 128, [#allocation3], [#allocation6]
        $region16: #{tpu_custom_call.1} parent=11 // pred_fallthru
          _
        // Predicated region
        $region17: #{tpu_custom_call.1} parent=11 // pred_check
          %p148 = pneg %p70
        $region18: #{tpu_custom_call.1} parent=11 // pred_check_branch
          %150 = sbr.rel (%p148) target = $region20
        $region19: #{tpu_custom_call.1} parent=11 // pred_region
          _
        $region20: #{tpu_custom_call.1} parent=11 // pred_fallthru
          _
      $region12: #{tpu_custom_call.1} parent=5 // pred_fallthru
        _
      %p151 = scmp.lt.s32.totalorder %s16, 2
      // Predicated region
      $region21: #{tpu_custom_call.1} parent=5 // pred_check
        %p152 = pneg %p151
      $region22: #{tpu_custom_call.1} parent=5 // pred_check_branch
        %154 = sbr.rel (%p152) target = $region24
      $region23: #{tpu_custom_call.1} parent=5 // pred_region
        // Predicated region
        $region25: #{tpu_custom_call.1} parent=23 // pred_check
          %p155 = pneg %p92
        $region26: #{tpu_custom_call.1} parent=23 // pred_check_branch
          %157 = sbr.rel (%p155) target = $region28
        $region27: #{tpu_custom_call.1} parent=23 // pred_region
          %s158 = sand.u32 %s82, 1
          %s159 = scalar_lea.sflag [#allocation4], %s158
          %s160 = sand.u32 %s82, 1
          %s161 = smul.addr %s160, 8
          %s162 = scalar_lea.vmem [#allocation7], %s161
          %s164 = ssub.s32 128, 128
          %165 = vsyncadd %s159, %s164
          %s166 = smul.addr %s24, 2
          %s167 = smul.addr %s23, 2
          %s168 = sadd.s32 %s166, %s167
          %s169 = smul.addr %s168, 64
          %s170 = scalar_lea.hbm %s2, %s169
          %s172 = sshll.u32 %s162, 4
          %s173 = int_to_ptr.vmem [resolvable:$true] %s172
          %175 = dma.hbm_to_vmem [thread:$0]  %s170, 128, %s173, %s159
        $region28: #{tpu_custom_call.1} parent=23 // pred_fallthru
          _
      $region24: #{tpu_custom_call.1} parent=5 // pred_fallthru
        _
      %p176 = scmp.le.s32.totalorder 1, %s16
      %p177 = scmp.lt.s32.totalorder %s16, 3
      %p178 = pnand %p176, %p177
      %p179 = pneg %p178
      // Predicated region
      $region29: #{tpu_custom_call.1} parent=5 // pred_check
        _
      $region30: #{tpu_custom_call.1} parent=5 // pred_check_branch
        %181 = sbr.rel (%p178) target = $region32
      $region31: #{tpu_custom_call.1} parent=5 // pred_region
        %s182 = ssub.s32 %s16, 1
        // Predicated region
        $region33: #{tpu_custom_call.1} parent=31 // pred_check
          %p183 = pneg %p49
        $region34: #{tpu_custom_call.1} parent=31 // pred_check_branch
          %185 = sbr.rel (%p183) target = $region36
        $region35: #{tpu_custom_call.1} parent=31 // pred_region
          %186 = dma.done [#allocation6], 128
        $region36: #{tpu_custom_call.1} parent=31 // pred_fallthru
          _
        %s187 = sand.u32 %s85, 1
        %s188 = scalar_lea.sflag [#allocation4], %s187
        %s189 = sand.u32 %s85, 1
        %s190 = smul.addr %s189, 8
        %s191 = scalar_lea.vmem [#allocation7], %s190
        // Predicated region
        $region37: #{tpu_custom_call.1} parent=31 // pred_check
          %p192 = pneg %p98
        $region38: #{tpu_custom_call.1} parent=31 // pred_check_branch
          %194 = sbr.rel (%p192) target = $region40
        $region39: #{tpu_custom_call.1} parent=31 // pred_region
          %195 = dma.done %s188, 128
        $region40: #{tpu_custom_call.1} parent=31 // pred_fallthru
          _
        %196 = sfence
        %p197 = pneg %p49
        %p198 = pneg %p46
        %p199 = pneg %p70
        %p200 = pneg %p67
        %s201 = sand.u32 %s85, 1
        %s202 = scalar_lea.sflag [#allocation4], %s201
        %s203 = sand.u32 %s85, 1
        %s204 = smul.addr %s203, 8
        %s205 = scalar_lea.vmem [#allocation7], %s204
        %p206 = pneg %p98
        %p207 = pneg %p95
        %p208 = pneg %p124
        %p209 = pneg %p121
        %s210 = sand.u32 %s111, 1
        %s211 = scalar_lea.sflag [#allocation5], %s210
        %s212 = sand.u32 %s111, 1
        %s213 = smul.addr %s212, 2
        %s214 = scalar_lea.vmem [#allocation8], %s213
        %v215 = vld [vmem:[%s191] sm:$0xff]
        %v217 = vcombine.high %v215, %v215
        %vm219 = vcmask 1043456
        %v220 = vsel %vm219, %v215, -inf
        %v221 = vrot.slane %v220, 4
        %v222 = vmax.f32 %v220, %v221
        %v223 = vrot.slane %v222, 2
        %v224 = vmax.f32 %v222, %v223
        %v225 = vrot.slane %v224, 1
        %v226 = vmax.f32 %v224, %v225
        %v227 = vsel %vm219, %v217, -inf
        %v228 = vrot.slane %v227, 4
        %v229 = vmax.f32 %v227, %v228
        %v230 = vrot.slane %v229, 2
        %v231 = vmax.f32 %v229, %v230
        %v232 = vrot.slane %v231, 1
        %v233 = vmax.f32 %v231, %v232
        %p234 = scmp.eq.s32.totalorder %s26, 0
        // Predicated region
        $region41: #{tpu_custom_call.1} parent=31 // pred_check
          %p235 = pneg %p234
        $region42: #{tpu_custom_call.1} parent=31 // pred_check_branch
          %237 = sbr.rel (%p235) target = $region44
        $region43: #{tpu_custom_call.1} parent=31 // pred_region
          %v240 = vcombine.low %v226, %v233
          %v242 = vunpack.c.l.s4 1966171168
          %v243 = vunpack.c.0.s8 %v242
          %v244 = vlaneseq
          %v245 = vshrl.u32 %v244, 7
          %v246 = vsub.s32 %v243, %v245
          %v247 = vrot.slane %v240, %v246
          %v249 = vunpack.c.l.s4 1966171168
          %v250 = vunpack.c.0.s8 %v249
          %v251 = vlaneseq
          %v252 = vshrl.u32 %v251, 7
          %v253 = vsub.s32 %v250, %v252
          %v254 = vrot.slane %v247, %v253
          %v256 = vlaneseq
          %vm257 = vcmp.ge.s32.totalorder %v256, 0
          %vm258 = vcmp.lt.s32.totalorder %v256, 256
          %vm259 = vmand %vm257, %vm258
          %260 = vst.msk [vmem:[%s214] sm:$0x3] %vm259, %v254
        $region44: #{tpu_custom_call.1} parent=31 // pred_fallthru
          _
        %p261 = scmp.gt.s32.totalorder %s26, 0
        // Predicated region
        $region45: #{tpu_custom_call.1} parent=31 // pred_check
          %p262 = pneg %p261
        $region46: #{tpu_custom_call.1} parent=31 // pred_check_branch
          %264 = sbr.rel (%p262) target = $region48
        $region47: #{tpu_custom_call.1} parent=31 // pred_region
          %v265 = vld [vmem:[%s214] sm:$0x3]
          %v268 = vcombine.low %v226, %v233
          %v270 = vunpack.c.l.s4 1966171168
          %v271 = vunpack.c.0.s8 %v270
          %v272 = vlaneseq
          %v273 = vshrl.u32 %v272, 7
          %v274 = vsub.s32 %v271, %v273
          %v275 = vrot.slane %v268, %v274
          %v277 = vunpack.c.l.s4 1966171168
          %v278 = vunpack.c.0.s8 %v277
          %v279 = vlaneseq
          %v280 = vshrl.u32 %v279, 7
          %v281 = vsub.s32 %v278, %v280
          %v282 = vrot.slane %v275, %v281
          %v284 = vmax.f32 %v265, %v282
          %v285 = vlaneseq
          %vm286 = vcmp.ge.s32.totalorder %v285, 0
          %vm287 = vcmp.lt.s32.totalorder %v285, 256
          %vm288 = vmand %vm286, %vm287
          %289 = vst.msk [vmem:[%s214] sm:$0x3] %vm288, %v284
        $region48: #{tpu_custom_call.1} parent=31 // pred_fallthru
          _
        // Predicated region
        $region49: #{tpu_custom_call.1} parent=31 // pred_check
          %p290 = pneg %p234
        $region50: #{tpu_custom_call.1} parent=31 // pred_check_branch
          %292 = sbr.rel (%p290) target = $region52
        $region51: #{tpu_custom_call.1} parent=31 // pred_region
          %v293 = vld [vmem:[%s214] sm:$0x3]
          %v294 = vlaneseq
          %vm295 = vcmp.ge.s32.totalorder %v294, 0
          %vm296 = vcmp.lt.s32.totalorder %v294, 51
          %vm297 = vmand %vm295, %vm296
          %298 = vst.msk [vmem:[#allocation2] sm:$0x1] %vm297, 0.0
          %vm299 = vcmp.ge.s32.totalorder %v294, 51
          %vm300 = vcmp.lt.s32.totalorder %v294, 102
          %vm301 = vmand %vm299, %vm300
          %302 = vst.msk [vmem:[#allocation2 + $0x2] sm:$0x1] %vm301, 0.0
          %304 = vrot.lane.b32.xlu0 %v293, 51
          %v305 = vpop.permute.xlu0 %304
          %v306 = vrot.slane %v305, 7
          %vm307 = vcmask 416768
          %v308 = vsel %vm307, %v306, %v305
          %vm310 = vcmp.lt.s32.totalorder %v294, 307
          %vm311 = vmand %vm299, %vm310
          %312 = vst.msk [vmem:[#allocation2] sm:$0x7] %vm311, %v308
          %v313 = vld [vmem:[%s1] sm:$0x3]
          %v314 = vadd.s32 %v313, 4294967293
          %vm315 = vcmp.ge.s32.totalorder %v314, 0
          %vm316 = vcmp.lt.s32.totalorder %v314, 16
          %vm317 = vmand %vm315, %vm316
          %v318 = vld [vmem:[#allocation2] sm:$0x3]
          %s319 = sld [smem:[#allocation3]]
          %v320 = vsel %vm317, %v318, 0.0
          %v321 = vstv %s319
          %v322 = vmul.f32 %v320, %v321
          %v323 = vadd.f32 %v322, 0.0
          %v324 = vld [vmem:[#allocation2] sm:$0x7]
          %s325 = sld [smem:[#allocation3 + $0x80]]
          %327 = vrot.lane.b32.xlu0 %v324, 112
          %v328 = vpop.permute.xlu0 %327
          %v329 = vrot.slane %v328, 1
          %vm330 = vcmask 916480
          %v331 = vsel %vm330, %v328, %v329
          %v333 = vsel %vm317, %v331, 0.0
          %v334 = vstv %s325
          %v335 = vmul.f32 %v333, %v334
          %v336 = vadd.f32 %v323, %v335
          %s337 = sld [smem:[#allocation3 + $0x100]]
          %338 = vrot.lane.b32.xlu0 %v324, 96
          %v339 = vpop.permute.xlu0 %338
          %v340 = vrot.slane %v339, 1
          %vm341 = vcmask 785408
          %v342 = vsel %vm341, %v339, %v340
          %v344 = vsel %vm317, %v342, 0.0
          %v345 = vstv %s337
          %v346 = vmul.f32 %v344, %v345
          %v347 = vadd.f32 %v336, %v346
          %s348 = sld [smem:[#allocation3 + $0x180]]
          %349 = vrot.lane.b32.xlu0 %v324, 80
          %v350 = vpop.permute.xlu0 %349
          %v351 = vrot.slane %v350, 1
          %vm352 = vcmask 654336
          %v353 = vsel %vm352, %v350, %v351
          %v355 = vsel %vm317, %v353, 0.0
          %v356 = vstv %s348
          %v357 = vmul.f32 %v355, %v356
          %v358 = vadd.f32 %v347, %v357
          %s359 = sld [smem:[#allocation3 + $0x200]]
          %360 = vrot.lane.b32.xlu0 %v324, 64
          %v361 = vpop.permute.xlu0 %360
          %v362 = vrot.slane %v361, 1
          %vm363 = vcmask 523264
          %v364 = vsel %vm363, %v361, %v362
          %v366 = vsel %vm317, %v364, 0.0
          %v367 = vstv %s359
          %v368 = vmul.f32 %v366, %v367
          %v369 = vadd.f32 %v358, %v368
          %s370 = sld [smem:[#allocation3 + $0x280]]
          %371 = vrot.lane.b32.xlu0 %v324, 48
          %v372 = vpop.permute.xlu0 %371
          %v373 = vrot.slane %v372, 1
          %vm374 = vcmask 392192
          %v375 = vsel %vm374, %v372, %v373
          %v377 = vsel %vm317, %v375, 0.0
          %v378 = vstv %s370
          %v379 = vmul.f32 %v377, %v378
          %v380 = vadd.f32 %v369, %v379
          %s381 = sld [smem:[#allocation3 + $0x300]]
          %382 = vrot.lane.b32.xlu0 %v324, 32
          %v383 = vpop.permute.xlu0 %382
          %v384 = vrot.slane %v383, 1
          %vm385 = vcmask 261120
          %v386 = vsel %vm385, %v383, %v384
          %v388 = vsel %vm317, %v386, 0.0
          %v389 = vstv %s381
          %v390 = vmul.f32 %v388, %v389
          %v391 = vadd.f32 %v380, %v390
          %v392 = vadd.s32 %v313, 4294967294
          %vm393 = vcmp.ge.s32.totalorder %v392, 0
          %vm394 = vcmp.lt.s32.totalorder %v392, 16
          %vm395 = vmand %vm393, %vm394
          %s396 = sld [smem:[#allocation3 + $0x1]]
          %397 = vrot.lane.b32.xlu0 %v324, 127
          %v398 = vpop.permute.xlu0 %397
          %v399 = vrot.slane %v398, 1
          %vm400 = vcmask 1039360
          %v401 = vsel %vm400, %v398, %v399
          %v403 = vsel %vm395, %v401, 0.0
          %v404 = vstv %s396
          %v405 = vmul.f32 %v403, %v404
          %v406 = vadd.f32 %v391, %v405
          %s407 = sld [smem:[#allocation3 + $0x81]]
          %408 = vrot.lane.b32.xlu0 %v324, 111
          %v409 = vpop.permute.xlu0 %408
          %v410 = vrot.slane %v409, 1
          %vm411 = vcmask 908288
          %v412 = vsel %vm411, %v409, %v410
          %v414 = vsel %vm395, %v412, 0.0
          %v415 = vstv %s407
          %v416 = vmul.f32 %v414, %v415
          %v417 = vadd.f32 %v406, %v416
          %s418 = sld [smem:[#allocation3 + $0x101]]
          %419 = vrot.lane.b32.xlu0 %v324, 95
          %v420 = vpop.permute.xlu0 %419
          %v421 = vrot.slane %v420, 1
          %vm422 = vcmask 777216
          %v423 = vsel %vm422, %v420, %v421
          %v425 = vsel %vm395, %v423, 0.0
          %v426 = vstv %s418
          %v427 = vmul.f32 %v425, %v426
          %v428 = vadd.f32 %v417, %v427
          %s429 = sld [smem:[#allocation3 + $0x181]]
          %430 = vrot.lane.b32.xlu0 %v324, 79
          %v431 = vpop.permute.xlu0 %430
          %v432 = vrot.slane %v431, 1
          %vm433 = vcmask 646144
          %v434 = vsel %vm433, %v431, %v432
          %v436 = vsel %vm395, %v434, 0.0
          %v437 = vstv %s429
          %v438 = vmul.f32 %v436, %v437
          %v439 = vadd.f32 %v428, %v438
          %s440 = sld [smem:[#allocation3 + $0x201]]
          %441 = vrot.lane.b32.xlu0 %v324, 63
          %v442 = vpop.permute.xlu0 %441
          %v443 = vrot.slane %v442, 1
          %vm444 = vcmask 515072
          %v445 = vsel %vm444, %v442, %v443
          %v447 = vsel %vm395, %v445, 0.0
          %v448 = vstv %s440
          %v449 = vmul.f32 %v447, %v448
          %v450 = vadd.f32 %v439, %v449
          %s451 = sld [smem:[#allocation3 + $0x281]]
          %452 = vrot.lane.b32.xlu0 %v324, 47
          %v453 = vpop.permute.xlu0 %452
          %v454 = vrot.slane %v453, 1
          %vm455 = vcmask 384000
          %v456 = vsel %vm455, %v453, %v454
          %v458 = vsel %vm395, %v456, 0.0
          %v459 = vstv %s451
          %v460 = vmul.f32 %v458, %v459
          %v461 = vadd.f32 %v450, %v460
          %s462 = sld [smem:[#allocation3 + $0x301]]
          %463 = vrot.lane.b32.xlu0 %v324, 31
          %v464 = vpop.permute.xlu0 %463
          %v465 = vrot.slane %v464, 1
          %vm466 = vcmask 252928
          %v467 = vsel %vm466, %v464, %v465
          %v469 = vsel %vm395, %v467, 0.0
          %v470 = vstv %s462
          %v471 = vmul.f32 %v469, %v470
          %v472 = vadd.f32 %v461, %v471
          %v473 = vadd.s32 %v313, 4294967295
          %vm474 = vcmp.ge.s32.totalorder %v473, 0
          %vm475 = vcmp.lt.s32.totalorder %v473, 16
          %vm476 = vmand %vm474, %vm475
          %s477 = sld [smem:[#allocation3 + $0x2]]
          %478 = vrot.lane.b32.xlu0 %v324, 126
          %v479 = vpop.permute.xlu0 %478
          %v480 = vrot.slane %v479, 1
          %vm481 = vcmask 1031168
          %v482 = vsel %vm481, %v479, %v480
          %v484 = vsel %vm476, %v482, 0.0
          %v485 = vstv %s477
          %v486 = vmul.f32 %v484, %v485
          %v487 = vadd.f32 %v472, %v486
          %s488 = sld [smem:[#allocation3 + $0x82]]
          %489 = vrot.lane.b32.xlu0 %v324, 110
          %v490 = vpop.permute.xlu0 %489
          %v491 = vrot.slane %v490, 1
          %vm492 = vcmask 900096
          %v493 = vsel %vm492, %v490, %v491
          %v495 = vsel %vm476, %v493, 0.0
          %v496 = vstv %s488
          %v497 = vmul.f32 %v495, %v496
          %v498 = vadd.f32 %v487, %v497
          %s499 = sld [smem:[#allocation3 + $0x102]]
          %500 = vrot.lane.b32.xlu0 %v324, 94
          %v501 = vpop.permute.xlu0 %500
          %v502 = vrot.slane %v501, 1
          %vm503 = vcmask 769024
          %v504 = vsel %vm503, %v501, %v502
          %v506 = vsel %vm476, %v504, 0.0
          %v507 = vstv %s499
          %v508 = vmul.f32 %v506, %v507
          %v509 = vadd.f32 %v498, %v508
          %s510 = sld [smem:[#allocation3 + $0x182]]
          %511 = vrot.lane.b32.xlu0 %v324, 78
          %v512 = vpop.permute.xlu0 %511
          %v513 = vrot.slane %v512, 1
          %vm514 = vcmask 637952
          %v515 = vsel %vm514, %v512, %v513
          %v517 = vsel %vm476, %v515, 0.0
          %v518 = vstv %s510
          %v519 = vmul.f32 %v517, %v518
          %v520 = vadd.f32 %v509, %v519
          %s521 = sld [smem:[#allocation3 + $0x202]]
          %522 = vrot.lane.b32.xlu0 %v324, 62
          %v523 = vpop.permute.xlu0 %522
          %v524 = vrot.slane %v523, 1
          %vm525 = vcmask 506880
          %v526 = vsel %vm525, %v523, %v524
          %v528 = vsel %vm476, %v526, 0.0
          %v529 = vstv %s521
          %v530 = vmul.f32 %v528, %v529
          %v531 = vadd.f32 %v520, %v530
          %s532 = sld [smem:[#allocation3 + $0x282]]
          %533 = vrot.lane.b32.xlu0 %v324, 46
          %v534 = vpop.permute.xlu0 %533
          %v535 = vrot.slane %v534, 1
          %vm536 = vcmask 375808
          %v537 = vsel %vm536, %v534, %v535
          %v539 = vsel %vm476, %v537, 0.0
          %v540 = vstv %s532
          %v541 = vmul.f32 %v539, %v540
          %v542 = vadd.f32 %v531, %v541
          %s543 = sld [smem:[#allocation3 + $0x302]]
          %544 = vrot.lane.b32.xlu0 %v324, 30
          %v545 = vpop.permute.xlu0 %544
          %v546 = vrot.slane %v545, 1
          %vm547 = vcmask 244736
          %v548 = vsel %vm547, %v545, %v546
          %v550 = vsel %vm476, %v548, 0.0
          %v551 = vstv %s543
          %v552 = vmul.f32 %v550, %v551
          %v553 = vadd.f32 %v542, %v552
          %vm554 = vcmp.ge.s32.totalorder %v313, 0
          %vm555 = vcmp.lt.s32.totalorder %v313, 16
          %vm556 = vmand %vm554, %vm555
          %s557 = sld [smem:[#allocation3 + $0x3]]
          %558 = vrot.lane.b32.xlu0 %v324, 125
          %v559 = vpop.permute.xlu0 %558
          %v560 = vrot.slane %v559, 1
          %vm561 = vcmask 1022976
          %v562 = vsel %vm561, %v559, %v560
          %v564 = vsel %vm556, %v562, 0.0
          %v565 = vstv %s557
          %v566 = vmul.f32 %v564, %v565
          %v567 = vadd.f32 %v553, %v566
          %s568 = sld [smem:[#allocation3 + $0x83]]
          %569 = vrot.lane.b32.xlu0 %v324, 109
          %v570 = vpop.permute.xlu0 %569
          %v571 = vrot.slane %v570, 1
          %vm572 = vcmask 891904
          %v573 = vsel %vm572, %v570, %v571
          %v575 = vsel %vm556, %v573, 0.0
          %v576 = vstv %s568
          %v577 = vmul.f32 %v575, %v576
          %v578 = vadd.f32 %v567, %v577
          %s579 = sld [smem:[#allocation3 + $0x103]]
          %580 = vrot.lane.b32.xlu0 %v324, 93
          %v581 = vpop.permute.xlu0 %580
          %v582 = vrot.slane %v581, 1
          %vm583 = vcmask 760832
          %v584 = vsel %vm583, %v581, %v582
          %v586 = vsel %vm556, %v584, 0.0
          %v587 = vstv %s579
          %v588 = vmul.f32 %v586, %v587
          %v589 = vadd.f32 %v578, %v588
          %s590 = sld [smem:[#allocation3 + $0x183]]
          %591 = vrot.lane.b32.xlu0 %v324, 77
          %v592 = vpop.permute.xlu0 %591
          %v593 = vrot.slane %v592, 1
          %vm594 = vcmask 629760
          %v595 = vsel %vm594, %v592, %v593
          %v597 = vsel %vm556, %v595, 0.0
          %v598 = vstv %s590
          %v599 = vmul.f32 %v597, %v598
          %v600 = vadd.f32 %v589, %v599
          %s601 = sld [smem:[#allocation3 + $0x203]]
          %602 = vrot.lane.b32.xlu0 %v324, 61
          %v603 = vpop.permute.xlu0 %602
          %v604 = vrot.slane %v603, 1
          %vm605 = vcmask 498688
          %v606 = vsel %vm605, %v603, %v604
          %v608 = vsel %vm556, %v606, 0.0
          %v609 = vstv %s601
          %v610 = vmul.f32 %v608, %v609
          %v611 = vadd.f32 %v600, %v610
          %s612 = sld [smem:[#allocation3 + $0x283]]
          %613 = vrot.lane.b32.xlu0 %v324, 45
          %v614 = vpop.permute.xlu0 %613
          %v615 = vrot.slane %v614, 1
          %vm616 = vcmask 367616
          %v617 = vsel %vm616, %v614, %v615
          %v619 = vsel %vm556, %v617, 0.0
          %v620 = vstv %s612
          %v621 = vmul.f32 %v619, %v620
          %v622 = vadd.f32 %v611, %v621
          %s623 = sld [smem:[#allocation3 + $0x303]]
          %624 = vrot.lane.b32.xlu0 %v324, 29
          %v625 = vpop.permute.xlu0 %624
          %v626 = vrot.slane %v625, 1
          %vm627 = vcmask 236544
          %v628 = vsel %vm627, %v625, %v626
          %v630 = vsel %vm556, %v628, 0.0
          %v631 = vstv %s623
          %v632 = vmul.f32 %v630, %v631
          %v633 = vadd.f32 %v622, %v632
          %v634 = vadd.s32 %v313, 1
          %vm635 = vcmp.ge.s32.totalorder %v634, 0
          %vm636 = vcmp.lt.s32.totalorder %v634, 16
          %vm637 = vmand %vm635, %vm636
          %s638 = sld [smem:[#allocation3 + $0x4]]
          %639 = vrot.lane.b32.xlu0 %v324, 124
          %v640 = vpop.permute.xlu0 %639
          %v641 = vrot.slane %v640, 1
          %vm642 = vcmask 1014784
          %v643 = vsel %vm642, %v640, %v641
          %v645 = vsel %vm637, %v643, 0.0
          %v646 = vstv %s638
          %v647 = vmul.f32 %v645, %v646
          %v648 = vadd.f32 %v633, %v647
          %s649 = sld [smem:[#allocation3 + $0x84]]
          %650 = vrot.lane.b32.xlu0 %v324, 108
          %v651 = vpop.permute.xlu0 %650
          %v652 = vrot.slane %v651, 1
          %vm653 = vcmask 883712
          %v654 = vsel %vm653, %v651, %v652
          %v656 = vsel %vm637, %v654, 0.0
          %v657 = vstv %s649
          %v658 = vmul.f32 %v656, %v657
          %v659 = vadd.f32 %v648, %v658
          %s660 = sld [smem:[#allocation3 + $0x104]]
          %661 = vrot.lane.b32.xlu0 %v324, 92
          %v662 = vpop.permute.xlu0 %661
          %v663 = vrot.slane %v662, 1
          %vm664 = vcmask 752640
          %v665 = vsel %vm664, %v662, %v663
          %v667 = vsel %vm637, %v665, 0.0
          %v668 = vstv %s660
          %v669 = vmul.f32 %v667, %v668
          %v670 = vadd.f32 %v659, %v669
          %s671 = sld [smem:[#allocation3 + $0x184]]
          %672 = vrot.lane.b32.xlu0 %v324, 76
          %v673 = vpop.permute.xlu0 %672
          %v674 = vrot.slane %v673, 1
          %vm675 = vcmask 621568
          %v676 = vsel %vm675, %v673, %v674
          %v678 = vsel %vm637, %v676, 0.0
          %v679 = vstv %s671
          %v680 = vmul.f32 %v678, %v679
          %v681 = vadd.f32 %v670, %v680
          %s682 = sld [smem:[#allocation3 + $0x204]]
          %683 = vrot.lane.b32.xlu0 %v324, 60
          %v684 = vpop.permute.xlu0 %683
          %v685 = vrot.slane %v684, 1
          %vm686 = vcmask 490496
          %v687 = vsel %vm686, %v684, %v685
          %v689 = vsel %vm637, %v687, 0.0
          %v690 = vstv %s682
          %v691 = vmul.f32 %v689, %v690
          %v692 = vadd.f32 %v681, %v691
          %s693 = sld [smem:[#allocation3 + $0x284]]
          %694 = vrot.lane.b32.xlu0 %v324, 44
          %v695 = vpop.permute.xlu0 %694
          %v696 = vrot.slane %v695, 1
          %vm697 = vcmask 359424
          %v698 = vsel %vm697, %v695, %v696
          %v700 = vsel %vm637, %v698, 0.0
          %v701 = vstv %s693
          %v702 = vmul.f32 %v700, %v701
          %v703 = vadd.f32 %v692, %v702
          %s704 = sld [smem:[#allocation3 + $0x304]]
          %705 = vrot.lane.b32.xlu0 %v324, 28
          %v706 = vpop.permute.xlu0 %705
          %v707 = vrot.slane %v706, 1
          %vm708 = vcmask 228352
          %v709 = vsel %vm708, %v706, %v707
          %v711 = vsel %vm637, %v709, 0.0
          %v712 = vstv %s704
          %v713 = vmul.f32 %v711, %v712
          %v714 = vadd.f32 %v703, %v713
          %v715 = vadd.s32 %v313, 2
          %vm716 = vcmp.ge.s32.totalorder %v715, 0
          %vm717 = vcmp.lt.s32.totalorder %v715, 16
          %vm718 = vmand %vm716, %vm717
          %s719 = sld [smem:[#allocation3 + $0x5]]
          %720 = vrot.lane.b32.xlu0 %v324, 123
          %v721 = vpop.permute.xlu0 %720
          %v722 = vrot.slane %v721, 1
          %vm723 = vcmask 1006592
          %v724 = vsel %vm723, %v721, %v722
          %v726 = vsel %vm718, %v724, 0.0
          %v727 = vstv %s719
          %v728 = vmul.f32 %v726, %v727
          %v729 = vadd.f32 %v714, %v728
          %s730 = sld [smem:[#allocation3 + $0x85]]
          %731 = vrot.lane.b32.xlu0 %v324, 107
          %v732 = vpop.permute.xlu0 %731
          %v733 = vrot.slane %v732, 1
          %vm734 = vcmask 875520
          %v735 = vsel %vm734, %v732, %v733
          %v737 = vsel %vm718, %v735, 0.0
          %v738 = vstv %s730
          %v739 = vmul.f32 %v737, %v738
          %v740 = vadd.f32 %v729, %v739
          %s741 = sld [smem:[#allocation3 + $0x105]]
          %742 = vrot.lane.b32.xlu0 %v324, 91
          %v743 = vpop.permute.xlu0 %742
          %v744 = vrot.slane %v743, 1
          %vm745 = vcmask 744448
          %v746 = vsel %vm745, %v743, %v744
          %v748 = vsel %vm718, %v746, 0.0
          %v749 = vstv %s741
          %v750 = vmul.f32 %v748, %v749
          %v751 = vadd.f32 %v740, %v750
          %s752 = sld [smem:[#allocation3 + $0x185]]
          %753 = vrot.lane.b32.xlu0 %v324, 75
          %v754 = vpop.permute.xlu0 %753
          %v755 = vrot.slane %v754, 1
          %vm756 = vcmask 613376
          %v757 = vsel %vm756, %v754, %v755
          %v759 = vsel %vm718, %v757, 0.0
          %v760 = vstv %s752
          %v761 = vmul.f32 %v759, %v760
          %v762 = vadd.f32 %v751, %v761
          %s763 = sld [smem:[#allocation3 + $0x205]]
          %764 = vrot.lane.b32.xlu0 %v324, 59
          %v765 = vpop.permute.xlu0 %764
          %v766 = vrot.slane %v765, 1
          %vm767 = vcmask 482304
          %v768 = vsel %vm767, %v765, %v766
          %v770 = vsel %vm718, %v768, 0.0
          %v771 = vstv %s763
          %v772 = vmul.f32 %v770, %v771
          %v773 = vadd.f32 %v762, %v772
          %s774 = sld [smem:[#allocation3 + $0x285]]
          %775 = vrot.lane.b32.xlu0 %v324, 43
          %v776 = vpop.permute.xlu0 %775
          %v777 = vrot.slane %v776, 1
          %vm778 = vcmask 351232
          %v779 = vsel %vm778, %v776, %v777
          %v781 = vsel %vm718, %v779, 0.0
          %v782 = vstv %s774
          %v783 = vmul.f32 %v781, %v782
          %v784 = vadd.f32 %v773, %v783
          %s785 = sld [smem:[#allocation3 + $0x305]]
          %786 = vrot.lane.b32.xlu0 %v324, 27
          %v787 = vpop.permute.xlu0 %786
          %v788 = vrot.slane %v787, 1
          %vm789 = vcmask 220160
          %v790 = vsel %vm789, %v787, %v788
          %v792 = vsel %vm718, %v790, 0.0
          %v793 = vstv %s785
          %v794 = vmul.f32 %v792, %v793
          %v795 = vadd.f32 %v784, %v794
          %v796 = vadd.s32 %v313, 3
          %vm797 = vcmp.ge.s32.totalorder %v796, 0
          %vm798 = vcmp.lt.s32.totalorder %v796, 16
          %vm799 = vmand %vm797, %vm798
          %s800 = sld [smem:[#allocation3 + $0x6]]
          %801 = vrot.lane.b32.xlu0 %v324, 122
          %v802 = vpop.permute.xlu0 %801
          %v803 = vrot.slane %v802, 1
          %vm804 = vcmask 998400
          %v805 = vsel %vm804, %v802, %v803
          %v807 = vsel %vm799, %v805, 0.0
          %v808 = vstv %s800
          %v809 = vmul.f32 %v807, %v808
          %v810 = vadd.f32 %v795, %v809
          %s811 = sld [smem:[#allocation3 + $0x86]]
          %812 = vrot.lane.b32.xlu0 %v324, 106
          %v813 = vpop.permute.xlu0 %812
          %v814 = vrot.slane %v813, 1
          %vm815 = vcmask 867328
          %v816 = vsel %vm815, %v813, %v814
          %v818 = vsel %vm799, %v816, 0.0
          %v819 = vstv %s811
          %v820 = vmul.f32 %v818, %v819
          %v821 = vadd.f32 %v810, %v820
          %s822 = sld [smem:[#allocation3 + $0x106]]
          %823 = vrot.lane.b32.xlu0 %v324, 90
          %v824 = vpop.permute.xlu0 %823
          %v825 = vrot.slane %v824, 1
          %vm826 = vcmask 736256
          %v827 = vsel %vm826, %v824, %v825
          %v829 = vsel %vm799, %v827, 0.0
          %v830 = vstv %s822
          %v831 = vmul.f32 %v829, %v830
          %v832 = vadd.f32 %v821, %v831
          %s833 = sld [smem:[#allocation3 + $0x186]]
          %834 = vrot.lane.b32.xlu0 %v324, 74
          %v835 = vpop.permute.xlu0 %834
          %v836 = vrot.slane %v835, 1
          %vm837 = vcmask 605184
          %v838 = vsel %vm837, %v835, %v836
          %v840 = vsel %vm799, %v838, 0.0
          %v841 = vstv %s833
          %v842 = vmul.f32 %v840, %v841
          %v843 = vadd.f32 %v832, %v842
          %s844 = sld [smem:[#allocation3 + $0x206]]
          %845 = vrot.lane.b32.xlu0 %v324, 58
          %v846 = vpop.permute.xlu0 %845
          %v847 = vrot.slane %v846, 1
          %vm848 = vcmask 474112
          %v849 = vsel %vm848, %v846, %v847
          %v851 = vsel %vm799, %v849, 0.0
          %v852 = vstv %s844
          %v853 = vmul.f32 %v851, %v852
          %v854 = vadd.f32 %v843, %v853
          %s855 = sld [smem:[#allocation3 + $0x286]]
          %856 = vrot.lane.b32.xlu0 %v324, 42
          %v857 = vpop.permute.xlu0 %856
          %v858 = vrot.slane %v857, 1
          %vm859 = vcmask 343040
          %v860 = vsel %vm859, %v857, %v858
          %v862 = vsel %vm799, %v860, 0.0
          %v863 = vstv %s855
          %v864 = vmul.f32 %v862, %v863
          %v865 = vadd.f32 %v854, %v864
          %s866 = sld [smem:[#allocation3 + $0x306]]
          %867 = vrot.lane.b32.xlu0 %v324, 26
          %v868 = vpop.permute.xlu0 %867
          %v869 = vrot.slane %v868, 1
          %vm870 = vcmask 211968
          %v871 = vsel %vm870, %v868, %v869
          %v873 = vsel %vm799, %v871, 0.0
          %v874 = vstv %s866
          %v875 = vmul.f32 %v873, %v874
          %v876 = vadd.f32 %v865, %v875
          %v877 = vxor.u32 %v876, 2147483648
          %v878 = vmul.f32 %v877, 1.442695
          %v879 = vpow.pop %v878
          %v880 = vadd.f32 %v879, 1.0
          %v881 = vrcp.pop %v880
          %v882 = vmul.f32 1.0, %v881
          %vm883 = vcmp.lt.s32.totalorder %v294, 256
          %vm884 = vmand %vm295, %vm883
          %885 = vst.msk [vmem:[%s214] sm:$0x3] %vm884, %v882
        $region52: #{tpu_custom_call.1} parent=31 // pred_fallthru
          _
        %s886 = sand.u32 %s111, 1
        %s887 = scalar_lea.sflag [#allocation5], %s886
        %s888 = sand.u32 %s111, 1
        %s889 = smul.addr %s888, 2
        %s890 = scalar_lea.vmem [#allocation8], %s889
        // Predicated region
        $region53: #{tpu_custom_call.1} parent=31 // pred_check
          %p891 = pneg %p121
        $region54: #{tpu_custom_call.1} parent=31 // pred_check_branch
          %893 = sbr.rel (%p891) target = $region56
        $region55: #{tpu_custom_call.1} parent=31 // pred_region
          %s895 = ssub.s32 32, 32
          %896 = vsyncadd %s887, %s895
          %s897 = smul.addr %s25, 2
          %s898 = smul.addr %s897, 16
          %s899 = scalar_lea.hbm %s3, %s898
          %s901 = sshll.u32 %s890, 4
          %s902 = int_to_ptr.vmem [resolvable:$true] %s901
          %904 = dma.vmem_to_hbm [thread:$0]  %s902, 32, %s899, %s887
        $region56: #{tpu_custom_call.1} parent=31 // pred_fallthru
          _
      $region32: #{tpu_custom_call.1} parent=5 // pred_fallthru
        _
      %p905 = scmp.le.s32.totalorder 2, %s16
      // Predicated region
      $region57: #{tpu_custom_call.1} parent=5 // pred_check
        %p906 = pneg %p905
      $region58: #{tpu_custom_call.1} parent=5 // pred_check_branch
        %908 = sbr.rel (%p906) target = $region60
      $region59: #{tpu_custom_call.1} parent=5 // pred_region
        %s909 = ssub.s32 %s16, 2
        // Predicated region
        $region61: #{tpu_custom_call.1} parent=59 // pred_check
          %p910 = pneg %p127
        $region62: #{tpu_custom_call.1} parent=59 // pred_check_branch
          %912 = sbr.rel (%p910) target = $region64
        $region63: #{tpu_custom_call.1} parent=59 // pred_region
          %s913 = sand.u32 %s112, 1
          %s914 = scalar_lea.sflag [#allocation5], %s913
          %s915 = sand.u32 %s112, 1
          %s916 = smul.addr %s915, 2
          %s917 = scalar_lea.vmem [#allocation8], %s916
          %918 = dma.done %s914, 32
        $region64: #{tpu_custom_call.1} parent=59 // pred_fallthru
          _
      $region60: #{tpu_custom_call.1} parent=5 // pred_fallthru
        _
    $region6: #{tpu_custom_call.1} parent=1 // loop_footer
      %s20 = sadd.s32 1, %s16
    $region7: #{tpu_custom_call.1} parent=1 // loop_footer_branch
      %15 = sbr.rel target = $region3
    $region8: #{tpu_custom_call.1} parent=1 // loop_exit
      _
    %919 = vsyncpa [#allocation4], 1
    %s920 = scalar_lea.sflag [#allocation4], 1
    %921 = vsyncpa %s920, 1
    %922 = vsyncpa [#allocation5], 1
    %s923 = scalar_lea.sflag [#allocation5], 1
    %924 = vsyncpa %s923, 1
    %925 = vsyncpa [#allocation6], 1
    %s926 = scalar_lea.sflag [#allocation6], 1
    %927 = vsyncpa %s926, 1

</llo_original>
